<compile_context>
chip_gen: v6e
topology: v6e:2x2x1
jax: 0.10.0
libtpu: 0.0.40
codegen_flags: <defaults>
</compile_context>

<pallas_src>
import math
import functools

import numpy as np
import jax
import jax.numpy as jnp
from jax import lax
from jax.experimental import pallas as pl
from jax.experimental.pallas import tpu as pltpu


# ----------------------------- Pallas kernel -----------------------------

def gnn_fused_kernel(a_in_ref, a_out_ref, h_ref,
                     w_ein_t_ref, b_ein_ref, w_eout_t_ref, b_eout_ref,
                     b_iah_ref, b_oah_ref,
                     w_ih_t_ref, b_ih_ref, w_hh_t_ref, b_hh_ref,
                     out_ref, *, num_steps, adj_vpu):
    """One batch-block of sessions; `num_steps` GNNCell applications in-VMEM."""
    BB, Np, Hp = h_ref.shape
    BBN = BB * Np
    mm_dtype = w_ein_t_ref.dtype          # matmul-operand dtype (f32 or bf16)

    a_in = a_in_ref[...]                  # (BB, Np, Np)  f32
    a_out = a_out_ref[...]                # (BB, Np, Np)  f32
    w_ein_t = w_ein_t_ref[...]            # (Hp, Hp)
    w_eout_t = w_eout_t_ref[...]          # (Hp, Hp)
    b_ein = b_ein_ref[...]                # (1, Hp)  f32
    b_eout = b_eout_ref[...]              # (1, Hp)
    b_iah = b_iah_ref[...]                # (1, Hp)
    b_oah = b_oah_ref[...]                # (1, Hp)
    w_ih_t = w_ih_t_ref[...]              # (2*Hp, 3*Hp)
    b_ih = b_ih_ref[...]                  # (1, 3*Hp)  f32
    w_hh_t = w_hh_t_ref[...]              # (Hp, 3*Hp)
    b_hh = b_hh_ref[...]                  # (1, 3*Hp)  f32

    def adj_contract(a, x):
        # a: (BB, Np, Np) f32, x: (BBN, Hp) f32 -> (BBN, Hp) f32
        x3 = x.reshape(BB, Np, Hp)
        if adj_vpu:
            # VPU broadcast-FMA: keeps these tiny-K contractions off the MXU
            # push slot so the MXU is free for the wide gate matmuls.
            acc = a[:, :, 0:1] * x3[:, 0:1, :]
            for j in range(1, Np):
                acc = acc + a[:, :, j:j + 1] * x3[:, j:j + 1, :]
            return acc.reshape(BBN, Hp)
        # TODO(synk): for mid-size N a block-diagonal grouping of sessions
        # (K ~ 128) would be better than BB independent small-K matmuls.
        return jnp.einsum('bij,bjh->bih',
                          a.astype(mm_dtype), x3.astype(mm_dtype),
                          preferred_element_type=jnp.float32).reshape(BBN, Hp)

    def step_body(_, h):
        hm = h.astype(mm_dtype)
        edge_in = jnp.dot(hm, w_ein_t, preferred_element_type=jnp.float32) + b_ein
        edge_out = jnp.dot(hm, w_eout_t, preferred_element_type=jnp.float32) + b_eout

        input_in = adj_contract(a_in, edge_in) + b_iah
        input_out = adj_contract(a_out, edge_out) + b_oah

        # Fused gate matmuls: gate boundaries are multiples of Hp=128 so the
        # concatenation and the three gate slices are vreg-aligned (free).
        inputs = jnp.concatenate([input_in, input_out], axis=-1)   # (BBN, 2Hp)
        gi = jnp.dot(inputs.astype(mm_dtype), w_ih_t,
                     preferred_element_type=jnp.float32) + b_ih     # (BBN, 3Hp)
        gh = jnp.dot(hm, w_hh_t,
                     preferred_element_type=jnp.float32) + b_hh     # (BBN, 3Hp)

        i_r, i_i, i_n = gi[:, :Hp], gi[:, Hp:2 * Hp], gi[:, 2 * Hp:]
        h_r, h_i, h_n = gh[:, :Hp], gh[:, Hp:2 * Hp], gh[:, 2 * Hp:]

        resetgate = jax.nn.sigmoid(i_r + h_r)
        inputgate = jax.nn.sigmoid(i_i + h_i)
        newgate = jnp.tanh(i_n + resetgate * h_n)
        return newgate + inputgate * (h - newgate)

    h = h_ref[...].reshape(BBN, Hp)
    if num_steps == 1:
        h = step_body(0, h)
    else:
        h = lax.fori_loop(0, num_steps, step_body, h,
                          unroll=True if num_steps <= 4 else False)
    out_ref[...] = h.reshape(BB, Np, Hp)


# ----------------------------- wrapper -----------------------------

def _round_up(x, m):
    return ((x + m - 1) // m) * m


def _choose_batch_blocks(B, Np, Hp):
    """Tile the batch so blocks stay a few MiB and the grid has >=2 steps."""
    per_session_bytes = (2 * Np * Np + 2 * Np * Hp) * 4        # a_in + a_out + h + out
    target_block_bytes = 2 << 20                               # ~2 MiB (x2 double-buffer)
    bb = max(1, target_block_bytes // max(per_session_bytes, 1))
    blocks = -(-B // bb)                                       # cdiv
    blocks = max(blocks, min(B, 8))                            # pipelining + both v7x cores
    return min(blocks, B)


@functools.partial(jax.jit, static_argnames=("step", "use_bf16"))
def gnn_forward(A, hidden, params, *, step=1, use_bf16=False):
    B, N, H = hidden.shape
    assert A.shape == (B, N, 2 * N)

    f32 = jnp.float32
    mm_dtype = jnp.bfloat16 if use_bf16 else jnp.float32

    Hp = _round_up(H, 128)        # lane padding  -> unmasked full-lane vregs
    Np = _round_up(N, 8)          # sublane padding -> free (BB,N,H)<->(BBN,H) reshapes

    batch_blocks = _choose_batch_blocks(B, Np, Hp)
    BB = -(-B // batch_blocks)
    B_pad = BB * batch_blocks

    # ---- pad activations (zero padding is exact: padded lanes/rows stay 0) ----
    a_in = jnp.zeros((B_pad, Np, Np), f32).at[:B, :N, :N].set(A[:, :, :N])
    a_out = jnp.zeros((B_pad, Np, Np), f32).at[:B, :N, :N].set(A[:, :, N:2 * N])
    h0 = jnp.zeros((B_pad, Np, Hp), f32).at[:B, :N, :H].set(hidden)

    # ---- pad / pre-transpose / fuse weights ----
    def pad_sq_t(w):                       # (H,H) -> zero-padded W.T in (Hp,Hp)
        return jnp.zeros((Hp, Hp), f32).at[:H, :H].set(w.T)

    def pad_vec(b):                        # (H,)  -> (1, Hp)
        return jnp.zeros((1, Hp), f32).at[0, :H].set(b)

    w_ein_t = pad_sq_t(params['w_edge_in'])
    w_eout_t = pad_sq_t(params['w_edge_out'])
    b_ein = pad_vec(params['b_edge_in'])
    b_eout = pad_vec(params['b_edge_out'])
    b_iah = pad_vec(params['b_iah'])
    b_oah = pad_vec(params['b_oah'])

    # Fused gate weights: one (2Hp, 3Hp) and one (Hp, 3Hp) matrix with each
    # gate occupying a 128-aligned column block.
    w_ih = params['w_ih']                  # (3H, 2H) rows = [r|i|n], cols = [in|out]
    w_hh = params['w_hh']                  # (3H, H)
    w_ih_t = jnp.zeros((2 * Hp, 3 * Hp), f32)
    w_hh_t = jnp.zeros((Hp, 3 * Hp), f32)
    b_ih = jnp.zeros((1, 3 * Hp), f32)
    b_hh = jnp.zeros((1, 3 * Hp), f32)
    for g in range(3):
        wg = w_ih[g * H:(g + 1) * H, :]                                     # (H, 2H)
        w_ih_t = w_ih_t.at[:H, g * Hp:g * Hp + H].set(wg[:, :H].T)          # "in" half
        w_ih_t = w_ih_t.at[Hp:Hp + H, g * Hp:g * Hp + H].set(wg[:, H:].T)   # "out" half
        w_hh_t = w_hh_t.at[:H, g * Hp:g * Hp + H].set(w_hh[g * H:(g + 1) * H, :].T)
        b_ih = b_ih.at[0, g * Hp:g * Hp + H].set(params['b_ih'][g * H:(g + 1) * H])
        b_hh = b_hh.at[0, g * Hp:g * Hp + H].set(params['b_hh'][g * H:(g + 1) * H])

    # bf16 only touches MXU operands (f32 accumulation, f32 elementwise math).
    w_ein_t = w_ein_t.astype(mm_dtype)
    w_eout_t = w_eout_t.astype(mm_dtype)
    w_ih_t = w_ih_t.astype(mm_dtype)
    w_hh_t = w_hh_t.astype(mm_dtype)

    adj_vpu = (Np <= 32)

    # ---- explicit VMEM budget ----
    mm_bytes = 2 if use_bf16 else 4
    weight_bytes = 11 * Hp * Hp * mm_bytes + 10 * Hp * 4
    block_io_bytes = BB * (2 * Np * Np + 2 * Np * Hp) * 4     # a_in, a_out, h, out
    tmp_bytes = BB * Np * Hp * 4 * 16                         # live per-step temporaries
    vmem_limit = int(min(48 << 20,
                         max(16 << 20,
                             2 * block_io_bytes + weight_bytes + tmp_bytes + (4 << 20))))

    kernel = functools.partial(gnn_fused_kernel, num_steps=step, adj_vpu=adj_vpu)

    def bspec(shape):
        return pl.BlockSpec(shape, lambda i: (i, 0, 0))

    def wspec(shape):
        return pl.BlockSpec(shape, lambda i: (0, 0))

    out = pl.pallas_call(
        kernel,
        out_shape=jax.ShapeDtypeStruct((B_pad, Np, Hp), jnp.float32),
        grid=(batch_blocks,),
        in_specs=[bspec((BB, Np, Np)), bspec((BB, Np, Np)), bspec((BB, Np, Hp)),
                  wspec((Hp, Hp)), wspec((1, Hp)),
                  wspec((Hp, Hp)), wspec((1, Hp)),
                  wspec((1, Hp)), wspec((1, Hp)),
                  wspec((2 * Hp, 3 * Hp)), wspec((1, 3 * Hp)),
                  wspec((Hp, 3 * Hp)), wspec((1, 3 * Hp))],
        out_specs=bspec((BB, Np, Hp)),
        compiler_params=pltpu.CompilerParams(
            dimension_semantics=("parallel",),
            vmem_limit_bytes=vmem_limit),
    )(a_in, a_out, h0,
      w_ein_t, b_ein, w_eout_t, b_eout,
      b_iah, b_oah,
      w_ih_t, b_ih, w_hh_t, b_hh)

    return out[:B, :N, :H]


# ----------------------------- pure-JAX reference -----------------------------

def gnn_ref(A, hidden, params, *, step=1):
    H = hidden.shape[-1]
    N = A.shape[1]
    for _ in range(step):
        edge_in = hidden @ params['w_edge_in'].T + params['b_edge_in']
        edge_out = hidden @ params['w_edge_out'].T + params['b_edge_out']
        input_in = jnp.matmul(A[:, :, :N], edge_in) + params['b_iah']
        input_out = jnp.matmul(A[:, :, N:2 * N], edge_out) + params['b_oah']
        inputs = jnp.concatenate([input_in, input_out], axis=2)
        gi = inputs @ params['w_ih'].T + params['b_ih']
        gh = hidden @ params['w_hh'].T + params['b_hh']
        i_r, i_i, i_n = gi[..., :H], gi[..., H:2 * H], gi[..., 2 * H:]
        h_r, h_i, h_n = gh[..., :H], gh[..., H:2 * H], gh[..., 2 * H:]
        rg = jax.nn.sigmoid(i_r + h_r)
        ig = jax.nn.sigmoid(i_i + h_i)
        ng = jnp.tanh(i_n + rg * h_n)
        hidden = ng + ig * (hidden - ng)
    return hidden


# ----------------------------- parameter init -----------------------------

def init_params(key, H):
    stdv = 1.0 / math.sqrt(H)
    keys = list(jax.random.split(key, 12))
    ki = iter(keys)

    def u(shape):
        return jax.random.uniform(next(ki), shape, jnp.float32, -stdv, stdv)

    # TODO(synk): linear_edge_f exists in the PyTorch module but is never used
    # in forward(), so it is intentionally not instantiated here.
    return dict(
        w_ih=u((3 * H, 2 * H)), w_hh=u((3 * H, H)),
        b_ih=u((3 * H,)), b_hh=u((3 * H,)),
        b_iah=u((H,)), b_oah=u((H,)),
        w_edge_in=u((H, H)), b_edge_in=u((H,)),
        w_edge_out=u((H, H)), b_edge_out=u((H,)),
    )


# ----------------------------- main -----------------------------

if __name__ == "__main__":
    B, N, H, step = 2, 8, 32, 2

    key = jax.random.PRNGKey(0)
    kp, ka, kh = jax.random.split(key, 3)
    params = init_params(kp, H)

    A = jax.random.uniform(ka, (B, N, 2 * N), dtype=jnp.float32)   # [A_in | A_out]
    hidden = jax.random.normal(kh, (B, N, H), dtype=jnp.float32) * 0.5

    ref = gnn_ref(A, hidden, params, step=step)

    # f32 MXU operands: exact-path correctness check.
    out = gnn_forward(A, hidden, params, step=step, use_bf16=False)
    jax.block_until_ready(out)
    np.testing.assert_allclose(np.asarray(out), np.asarray(ref), rtol=1e-4, atol=1e-4)

    # bf16 MXU operands (f32 accumulation + f32 gate math): perf path on v6e/v7x.
    out_bf16 = gnn_forward(A, hidden, params, step=step, use_bf16=True)
    jax.block_until_ready(out_bf16)
    np.testing.assert_allclose(np.asarray(out_bf16), np.asarray(ref), rtol=2e-2, atol=2e-2)

    print("KERNEL_OK")
</pallas_src>

<mosaic_0001>
module attributes {stable_mosaic.version = 11 : i64} {
  func.func @gnn_fused_kernel(%arg0: i32, %arg1: memref<1x8x8xf32, #tpu.memory_space<vmem>>, %arg2: memref<1x8x8xf32, #tpu.memory_space<vmem>>, %arg3: memref<1x8x128xf32, #tpu.memory_space<vmem>>, %arg4: memref<128x128xf32, #tpu.memory_space<vmem>>, %arg5: memref<1x128xf32, #tpu.memory_space<vmem>>, %arg6: memref<128x128xf32, #tpu.memory_space<vmem>>, %arg7: memref<1x128xf32, #tpu.memory_space<vmem>>, %arg8: memref<1x128xf32, #tpu.memory_space<vmem>>, %arg9: memref<1x128xf32, #tpu.memory_space<vmem>>, %arg10: memref<256x384xf32, #tpu.memory_space<vmem>>, %arg11: memref<1x384xf32, #tpu.memory_space<vmem>>, %arg12: memref<128x384xf32, #tpu.memory_space<vmem>>, %arg13: memref<1x384xf32, #tpu.memory_space<vmem>>, %arg14: memref<1x8x128xf32, #tpu.memory_space<vmem>>) attributes {dimension_semantics = [#tpu.dimension_semantics<parallel>], iteration_bounds = array<i64: 2>, scalar_prefetch = 0 : i64, scratch_operands = 0 : i64, tpu.core_type = #tpu.core_type<tc>, window_params = [{transform_indices = @transform_0, window_bounds = array<i64: 1, 8, 8>}, {transform_indices = @transform_1, window_bounds = array<i64: 1, 8, 8>}, {transform_indices = @transform_2, window_bounds = array<i64: 1, 8, 128>}, {pipeline_mode = #tpu.pipeline_mode<synchronous>, transform_indices = @transform_3, window_bounds = array<i64: 128, 128>}, {pipeline_mode = #tpu.pipeline_mode<synchronous>, transform_indices = @transform_4, window_bounds = array<i64: 1, 128>}, {pipeline_mode = #tpu.pipeline_mode<synchronous>, transform_indices = @transform_5, window_bounds = array<i64: 128, 128>}, {pipeline_mode = #tpu.pipeline_mode<synchronous>, transform_indices = @transform_6, window_bounds = array<i64: 1, 128>}, {pipeline_mode = #tpu.pipeline_mode<synchronous>, transform_indices = @transform_7, window_bounds = array<i64: 1, 128>}, {pipeline_mode = #tpu.pipeline_mode<synchronous>, transform_indices = @transform_8, window_bounds = array<i64: 1, 128>}, {pipeline_mode = #tpu.pipeline_mode<synchronous>, transform_indices = @transform_9, window_bounds = array<i64: 256, 384>}, {pipeline_mode = #tpu.pipeline_mode<synchronous>, transform_indices = @transform_10, window_bounds = array<i64: 1, 384>}, {pipeline_mode = #tpu.pipeline_mode<synchronous>, transform_indices = @transform_11, window_bounds = array<i64: 128, 384>}, {pipeline_mode = #tpu.pipeline_mode<synchronous>, transform_indices = @transform_12, window_bounds = array<i64: 1, 384>}, {transform_indices = @transform_13, window_bounds = array<i64: 1, 8, 128>}]} {
    %c0 = arith.constant 0 : index
    %c0_0 = arith.constant 0 : index
    %c0_1 = arith.constant 0 : index
    %0 = vector.load %arg1[%c0, %c0_0, %c0_1] : memref<1x8x8xf32, #tpu.memory_space<vmem>>, vector<1x8x8xf32>
    %c0_2 = arith.constant 0 : index
    %c0_3 = arith.constant 0 : index
    %c0_4 = arith.constant 0 : index
    %1 = vector.load %arg2[%c0_2, %c0_3, %c0_4] : memref<1x8x8xf32, #tpu.memory_space<vmem>>, vector<1x8x8xf32>
    %c0_5 = arith.constant 0 : index
    %c0_6 = arith.constant 0 : index
    %2 = vector.load %arg4[%c0_5, %c0_6] : memref<128x128xf32, #tpu.memory_space<vmem>>, vector<128x128xf32>
    %c0_7 = arith.constant 0 : index
    %c0_8 = arith.constant 0 : index
    %3 = vector.load %arg6[%c0_7, %c0_8] : memref<128x128xf32, #tpu.memory_space<vmem>>, vector<128x128xf32>
    %c0_9 = arith.constant 0 : index
    %c0_10 = arith.constant 0 : index
    %4 = vector.load %arg5[%c0_9, %c0_10] : memref<1x128xf32, #tpu.memory_space<vmem>>, vector<1x128xf32>
    %c0_11 = arith.constant 0 : index
    %c0_12 = arith.constant 0 : index
    %5 = vector.load %arg7[%c0_11, %c0_12] : memref<1x128xf32, #tpu.memory_space<vmem>>, vector<1x128xf32>
    %c0_13 = arith.constant 0 : index
    %c0_14 = arith.constant 0 : index
    %6 = vector.load %arg8[%c0_13, %c0_14] : memref<1x128xf32, #tpu.memory_space<vmem>>, vector<1x128xf32>
    %c0_15 = arith.constant 0 : index
    %c0_16 = arith.constant 0 : index
    %7 = vector.load %arg9[%c0_15, %c0_16] : memref<1x128xf32, #tpu.memory_space<vmem>>, vector<1x128xf32>
    %c0_17 = arith.constant 0 : index
    %c0_18 = arith.constant 0 : index
    %8 = vector.load %arg10[%c0_17, %c0_18] : memref<256x384xf32, #tpu.memory_space<vmem>>, vector<256x384xf32>
    %c0_19 = arith.constant 0 : index
    %c0_20 = arith.constant 0 : index
    %9 = vector.load %arg11[%c0_19, %c0_20] : memref<1x384xf32, #tpu.memory_space<vmem>>, vector<1x384xf32>
    %c0_21 = arith.constant 0 : index
    %c0_22 = arith.constant 0 : index
    %10 = vector.load %arg12[%c0_21, %c0_22] : memref<128x384xf32, #tpu.memory_space<vmem>>, vector<128x384xf32>
    %c0_23 = arith.constant 0 : index
    %c0_24 = arith.constant 0 : index
    %11 = vector.load %arg13[%c0_23, %c0_24] : memref<1x384xf32, #tpu.memory_space<vmem>>, vector<1x384xf32>
    %c0_25 = arith.constant 0 : index
    %c0_26 = arith.constant 0 : index
    %c0_27 = arith.constant 0 : index
    %12 = vector.load %arg3[%c0_25, %c0_26, %c0_27] : memref<1x8x128xf32, #tpu.memory_space<vmem>>, vector<1x8x128xf32>
    %13 = vector.shape_cast %12 : vector<1x8x128xf32> to vector<8x128xf32>
    %c0_i32 = arith.constant 0 : i32
    %cst = arith.constant dense<0.000000e+00> : vector<8x128xf32>
    %14 = tpu.matmul %13, %2, %cst {dimension_numbers = #tpu.dot_dimension_numbers<[1], [0], [0], [1], [0, 0, 1, 1], [], []>} : vector<8x128xf32>, vector<128x128xf32>, vector<8x128xf32> -> vector<8x128xf32>
    %15 = vector.broadcast %4 : vector<1x128xf32> to vector<8x128xf32>
    %16 = arith.addf %14, %15 : vector<8x128xf32>
    %cst_28 = arith.constant dense<0.000000e+00> : vector<8x128xf32>
    %17 = tpu.matmul %13, %3, %cst_28 {dimension_numbers = #tpu.dot_dimension_numbers<[1], [0], [0], [1], [0, 0, 1, 1], [], []>} : vector<8x128xf32>, vector<128x128xf32>, vector<8x128xf32> -> vector<8x128xf32>
    %18 = vector.broadcast %5 : vector<1x128xf32> to vector<8x128xf32>
    %19 = arith.addf %17, %18 : vector<8x128xf32>
    %20 = vector.shape_cast %16 : vector<8x128xf32> to vector<1x8x128xf32>
    %21 = vector.extract_strided_slice %0 {offsets = [0, 0, 0], sizes = [1, 8, 1], strides = [1, 1, 1]} : vector<1x8x8xf32> to vector<1x8x1xf32>
    %22 = vector.extract_strided_slice %20 {offsets = [0, 0, 0], sizes = [1, 1, 128], strides = [1, 1, 1]} : vector<1x8x128xf32> to vector<1x1x128xf32>
    %23 = vector.broadcast %21 : vector<1x8x1xf32> to vector<1x8x128xf32>
    %24 = vector.broadcast %22 : vector<1x1x128xf32> to vector<1x8x128xf32>
    %25 = arith.mulf %23, %24 : vector<1x8x128xf32>
    %26 = vector.extract_strided_slice %0 {offsets = [0, 0, 1], sizes = [1, 8, 1], strides = [1, 1, 1]} : vector<1x8x8xf32> to vector<1x8x1xf32>
    %27 = vector.extract_strided_slice %20 {offsets = [0, 1, 0], sizes = [1, 1, 128], strides = [1, 1, 1]} : vector<1x8x128xf32> to vector<1x1x128xf32>
    %28 = vector.broadcast %26 : vector<1x8x1xf32> to vector<1x8x128xf32>
    %29 = vector.broadcast %27 : vector<1x1x128xf32> to vector<1x8x128xf32>
    %30 = arith.mulf %28, %29 : vector<1x8x128xf32>
    %31 = arith.addf %25, %30 : vector<1x8x128xf32>
    %32 = vector.extract_strided_slice %0 {offsets = [0, 0, 2], sizes = [1, 8, 1], strides = [1, 1, 1]} : vector<1x8x8xf32> to vector<1x8x1xf32>
    %33 = vector.extract_strided_slice %20 {offsets = [0, 2, 0], sizes = [1, 1, 128], strides = [1, 1, 1]} : vector<1x8x128xf32> to vector<1x1x128xf32>
    %34 = vector.broadcast %32 : vector<1x8x1xf32> to vector<1x8x128xf32>
    %35 = vector.broadcast %33 : vector<1x1x128xf32> to vector<1x8x128xf32>
    %36 = arith.mulf %34, %35 : vector<1x8x128xf32>
    %37 = arith.addf %31, %36 : vector<1x8x128xf32>
    %38 = vector.extract_strided_slice %0 {offsets = [0, 0, 3], sizes = [1, 8, 1], strides = [1, 1, 1]} : vector<1x8x8xf32> to vector<1x8x1xf32>
    %39 = vector.extract_strided_slice %20 {offsets = [0, 3, 0], sizes = [1, 1, 128], strides = [1, 1, 1]} : vector<1x8x128xf32> to vector<1x1x128xf32>
    %40 = vector.broadcast %38 : vector<1x8x1xf32> to vector<1x8x128xf32>
    %41 = vector.broadcast %39 : vector<1x1x128xf32> to vector<1x8x128xf32>
    %42 = arith.mulf %40, %41 : vector<1x8x128xf32>
    %43 = arith.addf %37, %42 : vector<1x8x128xf32>
    %44 = vector.extract_strided_slice %0 {offsets = [0, 0, 4], sizes = [1, 8, 1], strides = [1, 1, 1]} : vector<1x8x8xf32> to vector<1x8x1xf32>
    %45 = vector.extract_strided_slice %20 {offsets = [0, 4, 0], sizes = [1, 1, 128], strides = [1, 1, 1]} : vector<1x8x128xf32> to vector<1x1x128xf32>
    %46 = vector.broadcast %44 : vector<1x8x1xf32> to vector<1x8x128xf32>
    %47 = vector.broadcast %45 : vector<1x1x128xf32> to vector<1x8x128xf32>
    %48 = arith.mulf %46, %47 : vector<1x8x128xf32>
    %49 = arith.addf %43, %48 : vector<1x8x128xf32>
    %50 = vector.extract_strided_slice %0 {offsets = [0, 0, 5], sizes = [1, 8, 1], strides = [1, 1, 1]} : vector<1x8x8xf32> to vector<1x8x1xf32>
    %51 = vector.extract_strided_slice %20 {offsets = [0, 5, 0], sizes = [1, 1, 128], strides = [1, 1, 1]} : vector<1x8x128xf32> to vector<1x1x128xf32>
    %52 = vector.broadcast %50 : vector<1x8x1xf32> to vector<1x8x128xf32>
    %53 = vector.broadcast %51 : vector<1x1x128xf32> to vector<1x8x128xf32>
    %54 = arith.mulf %52, %53 : vector<1x8x128xf32>
    %55 = arith.addf %49, %54 : vector<1x8x128xf32>
    %56 = vector.extract_strided_slice %0 {offsets = [0, 0, 6], sizes = [1, 8, 1], strides = [1, 1, 1]} : vector<1x8x8xf32> to vector<1x8x1xf32>
    %57 = vector.extract_strided_slice %20 {offsets = [0, 6, 0], sizes = [1, 1, 128], strides = [1, 1, 1]} : vector<1x8x128xf32> to vector<1x1x128xf32>
    %58 = vector.broadcast %56 : vector<1x8x1xf32> to vector<1x8x128xf32>
    %59 = vector.broadcast %57 : vector<1x1x128xf32> to vector<1x8x128xf32>
    %60 = arith.mulf %58, %59 : vector<1x8x128xf32>
    %61 = arith.addf %55, %60 : vector<1x8x128xf32>
    %62 = vector.extract_strided_slice %0 {offsets = [0, 0, 7], sizes = [1, 8, 1], strides = [1, 1, 1]} : vector<1x8x8xf32> to vector<1x8x1xf32>
    %63 = vector.extract_strided_slice %20 {offsets = [0, 7, 0], sizes = [1, 1, 128], strides = [1, 1, 1]} : vector<1x8x128xf32> to vector<1x1x128xf32>
    %64 = vector.broadcast %62 : vector<1x8x1xf32> to vector<1x8x128xf32>
    %65 = vector.broadcast %63 : vector<1x1x128xf32> to vector<1x8x128xf32>
    %66 = arith.mulf %64, %65 : vector<1x8x128xf32>
    %67 = arith.addf %61, %66 : vector<1x8x128xf32>
    %68 = vector.shape_cast %67 : vector<1x8x128xf32> to vector<8x128xf32>
    %69 = vector.broadcast %6 : vector<1x128xf32> to vector<8x128xf32>
    %70 = arith.addf %68, %69 : vector<8x128xf32>
    %71 = vector.shape_cast %19 : vector<8x128xf32> to vector<1x8x128xf32>
    %72 = vector.extract_strided_slice %1 {offsets = [0, 0, 0], sizes = [1, 8, 1], strides = [1, 1, 1]} : vector<1x8x8xf32> to vector<1x8x1xf32>
    %73 = vector.extract_strided_slice %71 {offsets = [0, 0, 0], sizes = [1, 1, 128], strides = [1, 1, 1]} : vector<1x8x128xf32> to vector<1x1x128xf32>
    %74 = vector.broadcast %72 : vector<1x8x1xf32> to vector<1x8x128xf32>
    %75 = vector.broadcast %73 : vector<1x1x128xf32> to vector<1x8x128xf32>
    %76 = arith.mulf %74, %75 : vector<1x8x128xf32>
    %77 = vector.extract_strided_slice %1 {offsets = [0, 0, 1], sizes = [1, 8, 1], strides = [1, 1, 1]} : vector<1x8x8xf32> to vector<1x8x1xf32>
    %78 = vector.extract_strided_slice %71 {offsets = [0, 1, 0], sizes = [1, 1, 128], strides = [1, 1, 1]} : vector<1x8x128xf32> to vector<1x1x128xf32>
    %79 = vector.broadcast %77 : vector<1x8x1xf32> to vector<1x8x128xf32>
    %80 = vector.broadcast %78 : vector<1x1x128xf32> to vector<1x8x128xf32>
    %81 = arith.mulf %79, %80 : vector<1x8x128xf32>
    %82 = arith.addf %76, %81 : vector<1x8x128xf32>
    %83 = vector.extract_strided_slice %1 {offsets = [0, 0, 2], sizes = [1, 8, 1], strides = [1, 1, 1]} : vector<1x8x8xf32> to vector<1x8x1xf32>
    %84 = vector.extract_strided_slice %71 {offsets = [0, 2, 0], sizes = [1, 1, 128], strides = [1, 1, 1]} : vector<1x8x128xf32> to vector<1x1x128xf32>
    %85 = vector.broadcast %83 : vector<1x8x1xf32> to vector<1x8x128xf32>
    %86 = vector.broadcast %84 : vector<1x1x128xf32> to vector<1x8x128xf32>
    %87 = arith.mulf %85, %86 : vector<1x8x128xf32>
    %88 = arith.addf %82, %87 : vector<1x8x128xf32>
    %89 = vector.extract_strided_slice %1 {offsets = [0, 0, 3], sizes = [1, 8, 1], strides = [1, 1, 1]} : vector<1x8x8xf32> to vector<1x8x1xf32>
    %90 = vector.extract_strided_slice %71 {offsets = [0, 3, 0], sizes = [1, 1, 128], strides = [1, 1, 1]} : vector<1x8x128xf32> to vector<1x1x128xf32>
    %91 = vector.broadcast %89 : vector<1x8x1xf32> to vector<1x8x128xf32>
    %92 = vector.broadcast %90 : vector<1x1x128xf32> to vector<1x8x128xf32>
    %93 = arith.mulf %91, %92 : vector<1x8x128xf32>
    %94 = arith.addf %88, %93 : vector<1x8x128xf32>
    %95 = vector.extract_strided_slice %1 {offsets = [0, 0, 4], sizes = [1, 8, 1], strides = [1, 1, 1]} : vector<1x8x8xf32> to vector<1x8x1xf32>
    %96 = vector.extract_strided_slice %71 {offsets = [0, 4, 0], sizes = [1, 1, 128], strides = [1, 1, 1]} : vector<1x8x128xf32> to vector<1x1x128xf32>
    %97 = vector.broadcast %95 : vector<1x8x1xf32> to vector<1x8x128xf32>
    %98 = vector.broadcast %96 : vector<1x1x128xf32> to vector<1x8x128xf32>
    %99 = arith.mulf %97, %98 : vector<1x8x128xf32>
    %100 = arith.addf %94, %99 : vector<1x8x128xf32>
    %101 = vector.extract_strided_slice %1 {offsets = [0, 0, 5], sizes = [1, 8, 1], strides = [1, 1, 1]} : vector<1x8x8xf32> to vector<1x8x1xf32>
    %102 = vector.extract_strided_slice %71 {offsets = [0, 5, 0], sizes = [1, 1, 128], strides = [1, 1, 1]} : vector<1x8x128xf32> to vector<1x1x128xf32>
    %103 = vector.broadcast %101 : vector<1x8x1xf32> to vector<1x8x128xf32>
    %104 = vector.broadcast %102 : vector<1x1x128xf32> to vector<1x8x128xf32>
    %105 = arith.mulf %103, %104 : vector<1x8x128xf32>
    %106 = arith.addf %100, %105 : vector<1x8x128xf32>
    %107 = vector.extract_strided_slice %1 {offsets = [0, 0, 6], sizes = [1, 8, 1], strides = [1, 1, 1]} : vector<1x8x8xf32> to vector<1x8x1xf32>
    %108 = vector.extract_strided_slice %71 {offsets = [0, 6, 0], sizes = [1, 1, 128], strides = [1, 1, 1]} : vector<1x8x128xf32> to vector<1x1x128xf32>
    %109 = vector.broadcast %107 : vector<1x8x1xf32> to vector<1x8x128xf32>
    %110 = vector.broadcast %108 : vector<1x1x128xf32> to vector<1x8x128xf32>
    %111 = arith.mulf %109, %110 : vector<1x8x128xf32>
    %112 = arith.addf %106, %111 : vector<1x8x128xf32>
    %113 = vector.extract_strided_slice %1 {offsets = [0, 0, 7], sizes = [1, 8, 1], strides = [1, 1, 1]} : vector<1x8x8xf32> to vector<1x8x1xf32>
    %114 = vector.extract_strided_slice %71 {offsets = [0, 7, 0], sizes = [1, 1, 128], strides = [1, 1, 1]} : vector<1x8x128xf32> to vector<1x1x128xf32>
    %115 = vector.broadcast %113 : vector<1x8x1xf32> to vector<1x8x128xf32>
    %116 = vector.broadcast %114 : vector<1x1x128xf32> to vector<1x8x128xf32>
    %117 = arith.mulf %115, %116 : vector<1x8x128xf32>
    %118 = arith.addf %112, %117 : vector<1x8x128xf32>
    %119 = vector.shape_cast %118 : vector<1x8x128xf32> to vector<8x128xf32>
    %120 = vector.broadcast %7 : vector<1x128xf32> to vector<8x128xf32>
    %121 = arith.addf %119, %120 : vector<8x128xf32>
    %122 = tpu.concatenate %70, %121 in 1 : vector<8x128xf32>, vector<8x128xf32> -> vector<8x256xf32>
    %cst_29 = arith.constant dense<0.000000e+00> : vector<8x384xf32>
    %123 = tpu.matmul %122, %8, %cst_29 {dimension_numbers = #tpu.dot_dimension_numbers<[1], [0], [0], [1], [0, 0, 1, 1], [], []>} : vector<8x256xf32>, vector<256x384xf32>, vector<8x384xf32> -> vector<8x384xf32>
    %124 = vector.broadcast %9 : vector<1x384xf32> to vector<8x384xf32>
    %125 = arith.addf %123, %124 : vector<8x384xf32>
    %cst_30 = arith.constant dense<0.000000e+00> : vector<8x384xf32>
    %126 = tpu.matmul %13, %10, %cst_30 {dimension_numbers = #tpu.dot_dimension_numbers<[1], [0], [0], [1], [0, 0, 1, 1], [], []>} : vector<8x128xf32>, vector<128x384xf32>, vector<8x384xf32> -> vector<8x384xf32>
    %127 = vector.broadcast %11 : vector<1x384xf32> to vector<8x384xf32>
    %128 = arith.addf %126, %127 : vector<8x384xf32>
    %129 = vector.extract_strided_slice %125 {offsets = [0, 0], sizes = [8, 128], strides = [1, 1]} : vector<8x384xf32> to vector<8x128xf32>
    %130 = vector.extract_strided_slice %125 {offsets = [0, 128], sizes = [8, 128], strides = [1, 1]} : vector<8x384xf32> to vector<8x128xf32>
    %131 = vector.extract_strided_slice %125 {offsets = [0, 256], sizes = [8, 128], strides = [1, 1]} : vector<8x384xf32> to vector<8x128xf32>
    %132 = vector.extract_strided_slice %128 {offsets = [0, 0], sizes = [8, 128], strides = [1, 1]} : vector<8x384xf32> to vector<8x128xf32>
    %133 = vector.extract_strided_slice %128 {offsets = [0, 128], sizes = [8, 128], strides = [1, 1]} : vector<8x384xf32> to vector<8x128xf32>
    %134 = vector.extract_strided_slice %128 {offsets = [0, 256], sizes = [8, 128], strides = [1, 1]} : vector<8x384xf32> to vector<8x128xf32>
    %135 = arith.addf %129, %132 : vector<8x128xf32>
    %136 = arith.negf %135 : vector<8x128xf32>
    %137 = math.exp %136 : vector<8x128xf32>
    %cst_31 = arith.constant 1.000000e+00 : f32
    %138 = vector.broadcast %cst_31 : f32 to vector<8x128xf32>
    %139 = arith.addf %138, %137 : vector<8x128xf32>
    %140 = arith.divf %138, %139 : vector<8x128xf32>
    %141 = arith.addf %130, %133 : vector<8x128xf32>
    %142 = arith.negf %141 : vector<8x128xf32>
    %143 = math.exp %142 : vector<8x128xf32>
    %cst_32 = arith.constant 1.000000e+00 : f32
    %144 = vector.broadcast %cst_32 : f32 to vector<8x128xf32>
    %145 = arith.addf %144, %143 : vector<8x128xf32>
    %146 = arith.divf %144, %145 : vector<8x128xf32>
    %147 = arith.mulf %140, %134 : vector<8x128xf32>
    %148 = arith.addf %131, %147 : vector<8x128xf32>
    %149 = math.tanh %148 : vector<8x128xf32>
    %150 = arith.subf %13, %149 : vector<8x128xf32>
    %151 = arith.mulf %146, %150 : vector<8x128xf32>
    %152 = arith.addf %149, %151 : vector<8x128xf32>
    %c1_i32 = arith.constant 1 : i32
    %cst_33 = arith.constant dense<0.000000e+00> : vector<8x128xf32>
    %153 = tpu.matmul %152, %2, %cst_33 {dimension_numbers = #tpu.dot_dimension_numbers<[1], [0], [0], [1], [0, 0, 1, 1], [], []>} : vector<8x128xf32>, vector<128x128xf32>, vector<8x128xf32> -> vector<8x128xf32>
    %154 = vector.broadcast %4 : vector<1x128xf32> to vector<8x128xf32>
    %155 = arith.addf %153, %154 : vector<8x128xf32>
    %cst_34 = arith.constant dense<0.000000e+00> : vector<8x128xf32>
    %156 = tpu.matmul %152, %3, %cst_34 {dimension_numbers = #tpu.dot_dimension_numbers<[1], [0], [0], [1], [0, 0, 1, 1], [], []>} : vector<8x128xf32>, vector<128x128xf32>, vector<8x128xf32> -> vector<8x128xf32>
    %157 = vector.broadcast %5 : vector<1x128xf32> to vector<8x128xf32>
    %158 = arith.addf %156, %157 : vector<8x128xf32>
    %159 = vector.shape_cast %155 : vector<8x128xf32> to vector<1x8x128xf32>
    %160 = vector.extract_strided_slice %0 {offsets = [0, 0, 0], sizes = [1, 8, 1], strides = [1, 1, 1]} : vector<1x8x8xf32> to vector<1x8x1xf32>
    %161 = vector.extract_strided_slice %159 {offsets = [0, 0, 0], sizes = [1, 1, 128], strides = [1, 1, 1]} : vector<1x8x128xf32> to vector<1x1x128xf32>
    %162 = vector.broadcast %160 : vector<1x8x1xf32> to vector<1x8x128xf32>
    %163 = vector.broadcast %161 : vector<1x1x128xf32> to vector<1x8x128xf32>
    %164 = arith.mulf %162, %163 : vector<1x8x128xf32>
    %165 = vector.extract_strided_slice %0 {offsets = [0, 0, 1], sizes = [1, 8, 1], strides = [1, 1, 1]} : vector<1x8x8xf32> to vector<1x8x1xf32>
    %166 = vector.extract_strided_slice %159 {offsets = [0, 1, 0], sizes = [1, 1, 128], strides = [1, 1, 1]} : vector<1x8x128xf32> to vector<1x1x128xf32>
    %167 = vector.broadcast %165 : vector<1x8x1xf32> to vector<1x8x128xf32>
    %168 = vector.broadcast %166 : vector<1x1x128xf32> to vector<1x8x128xf32>
    %169 = arith.mulf %167, %168 : vector<1x8x128xf32>
    %170 = arith.addf %164, %169 : vector<1x8x128xf32>
    %171 = vector.extract_strided_slice %0 {offsets = [0, 0, 2], sizes = [1, 8, 1], strides = [1, 1, 1]} : vector<1x8x8xf32> to vector<1x8x1xf32>
    %172 = vector.extract_strided_slice %159 {offsets = [0, 2, 0], sizes = [1, 1, 128], strides = [1, 1, 1]} : vector<1x8x128xf32> to vector<1x1x128xf32>
    %173 = vector.broadcast %171 : vector<1x8x1xf32> to vector<1x8x128xf32>
    %174 = vector.broadcast %172 : vector<1x1x128xf32> to vector<1x8x128xf32>
    %175 = arith.mulf %173, %174 : vector<1x8x128xf32>
    %176 = arith.addf %170, %175 : vector<1x8x128xf32>
    %177 = vector.extract_strided_slice %0 {offsets = [0, 0, 3], sizes = [1, 8, 1], strides = [1, 1, 1]} : vector<1x8x8xf32> to vector<1x8x1xf32>
    %178 = vector.extract_strided_slice %159 {offsets = [0, 3, 0], sizes = [1, 1, 128], strides = [1, 1, 1]} : vector<1x8x128xf32> to vector<1x1x128xf32>
    %179 = vector.broadcast %177 : vector<1x8x1xf32> to vector<1x8x128xf32>
    %180 = vector.broadcast %178 : vector<1x1x128xf32> to vector<1x8x128xf32>
    %181 = arith.mulf %179, %180 : vector<1x8x128xf32>
    %182 = arith.addf %176, %181 : vector<1x8x128xf32>
    %183 = vector.extract_strided_slice %0 {offsets = [0, 0, 4], sizes = [1, 8, 1], strides = [1, 1, 1]} : vector<1x8x8xf32> to vector<1x8x1xf32>
    %184 = vector.extract_strided_slice %159 {offsets = [0, 4, 0], sizes = [1, 1, 128], strides = [1, 1, 1]} : vector<1x8x128xf32> to vector<1x1x128xf32>
    %185 = vector.broadcast %183 : vector<1x8x1xf32> to vector<1x8x128xf32>
    %186 = vector.broadcast %184 : vector<1x1x128xf32> to vector<1x8x128xf32>
    %187 = arith.mulf %185, %186 : vector<1x8x128xf32>
    %188 = arith.addf %182, %187 : vector<1x8x128xf32>
    %189 = vector.extract_strided_slice %0 {offsets = [0, 0, 5], sizes = [1, 8, 1], strides = [1, 1, 1]} : vector<1x8x8xf32> to vector<1x8x1xf32>
    %190 = vector.extract_strided_slice %159 {offsets = [0, 5, 0], sizes = [1, 1, 128], strides = [1, 1, 1]} : vector<1x8x128xf32> to vector<1x1x128xf32>
    %191 = vector.broadcast %189 : vector<1x8x1xf32> to vector<1x8x128xf32>
    %192 = vector.broadcast %190 : vector<1x1x128xf32> to vector<1x8x128xf32>
    %193 = arith.mulf %191, %192 : vector<1x8x128xf32>
    %194 = arith.addf %188, %193 : vector<1x8x128xf32>
    %195 = vector.extract_strided_slice %0 {offsets = [0, 0, 6], sizes = [1, 8, 1], strides = [1, 1, 1]} : vector<1x8x8xf32> to vector<1x8x1xf32>
    %196 = vector.extract_strided_slice %159 {offsets = [0, 6, 0], sizes = [1, 1, 128], strides = [1, 1, 1]} : vector<1x8x128xf32> to vector<1x1x128xf32>
    %197 = vector.broadcast %195 : vector<1x8x1xf32> to vector<1x8x128xf32>
    %198 = vector.broadcast %196 : vector<1x1x128xf32> to vector<1x8x128xf32>
    %199 = arith.mulf %197, %198 : vector<1x8x128xf32>
    %200 = arith.addf %194, %199 : vector<1x8x128xf32>
    %201 = vector.extract_strided_slice %0 {offsets = [0, 0, 7], sizes = [1, 8, 1], strides = [1, 1, 1]} : vector<1x8x8xf32> to vector<1x8x1xf32>
    %202 = vector.extract_strided_slice %159 {offsets = [0, 7, 0], sizes = [1, 1, 128], strides = [1, 1, 1]} : vector<1x8x128xf32> to vector<1x1x128xf32>
    %203 = vector.broadcast %201 : vector<1x8x1xf32> to vector<1x8x128xf32>
    %204 = vector.broadcast %202 : vector<1x1x128xf32> to vector<1x8x128xf32>
    %205 = arith.mulf %203, %204 : vector<1x8x128xf32>
    %206 = arith.addf %200, %205 : vector<1x8x128xf32>
    %207 = vector.shape_cast %206 : vector<1x8x128xf32> to vector<8x128xf32>
    %208 = vector.broadcast %6 : vector<1x128xf32> to vector<8x128xf32>
    %209 = arith.addf %207, %208 : vector<8x128xf32>
    %210 = vector.shape_cast %158 : vector<8x128xf32> to vector<1x8x128xf32>
    %211 = vector.extract_strided_slice %1 {offsets = [0, 0, 0], sizes = [1, 8, 1], strides = [1, 1, 1]} : vector<1x8x8xf32> to vector<1x8x1xf32>
    %212 = vector.extract_strided_slice %210 {offsets = [0, 0, 0], sizes = [1, 1, 128], strides = [1, 1, 1]} : vector<1x8x128xf32> to vector<1x1x128xf32>
    %213 = vector.broadcast %211 : vector<1x8x1xf32> to vector<1x8x128xf32>
    %214 = vector.broadcast %212 : vector<1x1x128xf32> to vector<1x8x128xf32>
    %215 = arith.mulf %213, %214 : vector<1x8x128xf32>
    %216 = vector.extract_strided_slice %1 {offsets = [0, 0, 1], sizes = [1, 8, 1], strides = [1, 1, 1]} : vector<1x8x8xf32> to vector<1x8x1xf32>
    %217 = vector.extract_strided_slice %210 {offsets = [0, 1, 0], sizes = [1, 1, 128], strides = [1, 1, 1]} : vector<1x8x128xf32> to vector<1x1x128xf32>
    %218 = vector.broadcast %216 : vector<1x8x1xf32> to vector<1x8x128xf32>
    %219 = vector.broadcast %217 : vector<1x1x128xf32> to vector<1x8x128xf32>
    %220 = arith.mulf %218, %219 : vector<1x8x128xf32>
    %221 = arith.addf %215, %220 : vector<1x8x128xf32>
    %222 = vector.extract_strided_slice %1 {offsets = [0, 0, 2], sizes = [1, 8, 1], strides = [1, 1, 1]} : vector<1x8x8xf32> to vector<1x8x1xf32>
    %223 = vector.extract_strided_slice %210 {offsets = [0, 2, 0], sizes = [1, 1, 128], strides = [1, 1, 1]} : vector<1x8x128xf32> to vector<1x1x128xf32>
    %224 = vector.broadcast %222 : vector<1x8x1xf32> to vector<1x8x128xf32>
    %225 = vector.broadcast %223 : vector<1x1x128xf32> to vector<1x8x128xf32>
    %226 = arith.mulf %224, %225 : vector<1x8x128xf32>
    %227 = arith.addf %221, %226 : vector<1x8x128xf32>
    %228 = vector.extract_strided_slice %1 {offsets = [0, 0, 3], sizes = [1, 8, 1], strides = [1, 1, 1]} : vector<1x8x8xf32> to vector<1x8x1xf32>
    %229 = vector.extract_strided_slice %210 {offsets = [0, 3, 0], sizes = [1, 1, 128], strides = [1, 1, 1]} : vector<1x8x128xf32> to vector<1x1x128xf32>
    %230 = vector.broadcast %228 : vector<1x8x1xf32> to vector<1x8x128xf32>
    %231 = vector.broadcast %229 : vector<1x1x128xf32> to vector<1x8x128xf32>
    %232 = arith.mulf %230, %231 : vector<1x8x128xf32>
    %233 = arith.addf %227, %232 : vector<1x8x128xf32>
    %234 = vector.extract_strided_slice %1 {offsets = [0, 0, 4], sizes = [1, 8, 1], strides = [1, 1, 1]} : vector<1x8x8xf32> to vector<1x8x1xf32>
    %235 = vector.extract_strided_slice %210 {offsets = [0, 4, 0], sizes = [1, 1, 128], strides = [1, 1, 1]} : vector<1x8x128xf32> to vector<1x1x128xf32>
    %236 = vector.broadcast %234 : vector<1x8x1xf32> to vector<1x8x128xf32>
    %237 = vector.broadcast %235 : vector<1x1x128xf32> to vector<1x8x128xf32>
    %238 = arith.mulf %236, %237 : vector<1x8x128xf32>
    %239 = arith.addf %233, %238 : vector<1x8x128xf32>
    %240 = vector.extract_strided_slice %1 {offsets = [0, 0, 5], sizes = [1, 8, 1], strides = [1, 1, 1]} : vector<1x8x8xf32> to vector<1x8x1xf32>
    %241 = vector.extract_strided_slice %210 {offsets = [0, 5, 0], sizes = [1, 1, 128], strides = [1, 1, 1]} : vector<1x8x128xf32> to vector<1x1x128xf32>
    %242 = vector.broadcast %240 : vector<1x8x1xf32> to vector<1x8x128xf32>
    %243 = vector.broadcast %241 : vector<1x1x128xf32> to vector<1x8x128xf32>
    %244 = arith.mulf %242, %243 : vector<1x8x128xf32>
    %245 = arith.addf %239, %244 : vector<1x8x128xf32>
    %246 = vector.extract_strided_slice %1 {offsets = [0, 0, 6], sizes = [1, 8, 1], strides = [1, 1, 1]} : vector<1x8x8xf32> to vector<1x8x1xf32>
    %247 = vector.extract_strided_slice %210 {offsets = [0, 6, 0], sizes = [1, 1, 128], strides = [1, 1, 1]} : vector<1x8x128xf32> to vector<1x1x128xf32>
    %248 = vector.broadcast %246 : vector<1x8x1xf32> to vector<1x8x128xf32>
    %249 = vector.broadcast %247 : vector<1x1x128xf32> to vector<1x8x128xf32>
    %250 = arith.mulf %248, %249 : vector<1x8x128xf32>
    %251 = arith.addf %245, %250 : vector<1x8x128xf32>
    %252 = vector.extract_strided_slice %1 {offsets = [0, 0, 7], sizes = [1, 8, 1], strides = [1, 1, 1]} : vector<1x8x8xf32> to vector<1x8x1xf32>
    %253 = vector.extract_strided_slice %210 {offsets = [0, 7, 0], sizes = [1, 1, 128], strides = [1, 1, 1]} : vector<1x8x128xf32> to vector<1x1x128xf32>
    %254 = vector.broadcast %252 : vector<1x8x1xf32> to vector<1x8x128xf32>
    %255 = vector.broadcast %253 : vector<1x1x128xf32> to vector<1x8x128xf32>
    %256 = arith.mulf %254, %255 : vector<1x8x128xf32>
    %257 = arith.addf %251, %256 : vector<1x8x128xf32>
    %258 = vector.shape_cast %257 : vector<1x8x128xf32> to vector<8x128xf32>
    %259 = vector.broadcast %7 : vector<1x128xf32> to vector<8x128xf32>
    %260 = arith.addf %258, %259 : vector<8x128xf32>
    %261 = tpu.concatenate %209, %260 in 1 : vector<8x128xf32>, vector<8x128xf32> -> vector<8x256xf32>
    %cst_35 = arith.constant dense<0.000000e+00> : vector<8x384xf32>
    %262 = tpu.matmul %261, %8, %cst_35 {dimension_numbers = #tpu.dot_dimension_numbers<[1], [0], [0], [1], [0, 0, 1, 1], [], []>} : vector<8x256xf32>, vector<256x384xf32>, vector<8x384xf32> -> vector<8x384xf32>
    %263 = vector.broadcast %9 : vector<1x384xf32> to vector<8x384xf32>
    %264 = arith.addf %262, %263 : vector<8x384xf32>
    %cst_36 = arith.constant dense<0.000000e+00> : vector<8x384xf32>
    %265 = tpu.matmul %152, %10, %cst_36 {dimension_numbers = #tpu.dot_dimension_numbers<[1], [0], [0], [1], [0, 0, 1, 1], [], []>} : vector<8x128xf32>, vector<128x384xf32>, vector<8x384xf32> -> vector<8x384xf32>
    %266 = vector.broadcast %11 : vector<1x384xf32> to vector<8x384xf32>
    %267 = arith.addf %265, %266 : vector<8x384xf32>
    %268 = vector.extract_strided_slice %264 {offsets = [0, 0], sizes = [8, 128], strides = [1, 1]} : vector<8x384xf32> to vector<8x128xf32>
    %269 = vector.extract_strided_slice %264 {offsets = [0, 128], sizes = [8, 128], strides = [1, 1]} : vector<8x384xf32> to vector<8x128xf32>
    %270 = vector.extract_strided_slice %264 {offsets = [0, 256], sizes = [8, 128], strides = [1, 1]} : vector<8x384xf32> to vector<8x128xf32>
    %271 = vector.extract_strided_slice %267 {offsets = [0, 0], sizes = [8, 128], strides = [1, 1]} : vector<8x384xf32> to vector<8x128xf32>
    %272 = vector.extract_strided_slice %267 {offsets = [0, 128], sizes = [8, 128], strides = [1, 1]} : vector<8x384xf32> to vector<8x128xf32>
    %273 = vector.extract_strided_slice %267 {offsets = [0, 256], sizes = [8, 128], strides = [1, 1]} : vector<8x384xf32> to vector<8x128xf32>
    %274 = arith.addf %268, %271 : vector<8x128xf32>
    %275 = arith.negf %274 : vector<8x128xf32>
    %276 = math.exp %275 : vector<8x128xf32>
    %cst_37 = arith.constant 1.000000e+00 : f32
    %277 = vector.broadcast %cst_37 : f32 to vector<8x128xf32>
    %278 = arith.addf %277, %276 : vector<8x128xf32>
    %279 = arith.divf %277, %278 : vector<8x128xf32>
    %280 = arith.addf %269, %272 : vector<8x128xf32>
    %281 = arith.negf %280 : vector<8x128xf32>
    %282 = math.exp %281 : vector<8x128xf32>
    %cst_38 = arith.constant 1.000000e+00 : f32
    %283 = vector.broadcast %cst_38 : f32 to vector<8x128xf32>
    %284 = arith.addf %283, %282 : vector<8x128xf32>
    %285 = arith.divf %283, %284 : vector<8x128xf32>
    %286 = arith.mulf %279, %273 : vector<8x128xf32>
    %287 = arith.addf %270, %286 : vector<8x128xf32>
    %288 = math.tanh %287 : vector<8x128xf32>
    %289 = arith.subf %152, %288 : vector<8x128xf32>
    %290 = arith.mulf %285, %289 : vector<8x128xf32>
    %291 = arith.addf %288, %290 : vector<8x128xf32>
    %292 = vector.shape_cast %291 : vector<8x128xf32> to vector<1x8x128xf32>
    %c0_39 = arith.constant 0 : index
    %c0_40 = arith.constant 0 : index
    %c0_41 = arith.constant 0 : index
    %293 = vector.load %arg14[%c0_39, %c0_40, %c0_41] : memref<1x8x128xf32, #tpu.memory_space<vmem>>, vector<1x8x128xf32>
    tpu.vector_store %arg14[%c0_39, %c0_40, %c0_41], %292 {strides = array<i32>} : memref<1x8x128xf32, #tpu.memory_space<vmem>>, vector<1x8x128xf32>,
    return
  }
  func.func @transform_0(%arg0: i32) -> (i32, i32, i32) {
    %c0_i32 = arith.constant 0 : i32
    %c0_i32_0 = arith.constant 0 : i32
    %c0_i32_1 = arith.constant 0 : i32
    return %arg0, %c0_i32, %c0_i32_0 : i32, i32, i32
  }
  func.func @transform_1(%arg0: i32) -> (i32, i32, i32) {
    %c0_i32 = arith.constant 0 : i32
    %c0_i32_0 = arith.constant 0 : i32
    %c0_i32_1 = arith.constant 0 : i32
    return %arg0, %c0_i32, %c0_i32_0 : i32, i32, i32
  }
  func.func @transform_2(%arg0: i32) -> (i32, i32, i32) {
    %c0_i32 = arith.constant 0 : i32
    %c0_i32_0 = arith.constant 0 : i32
    %c0_i32_1 = arith.constant 0 : i32
    return %arg0, %c0_i32, %c0_i32_0 : i32, i32, i32
  }
  func.func @transform_3(%arg0: i32) -> (i32, i32) {
    %c0_i32 = arith.constant 0 : i32
    %c0_i32_0 = arith.constant 0 : i32
    %c0_i32_1 = arith.constant 0 : i32
    return %c0_i32, %c0_i32_0 : i32, i32
  }
  func.func @transform_4(%arg0: i32) -> (i32, i32) {
    %c0_i32 = arith.constant 0 : i32
    %c0_i32_0 = arith.constant 0 : i32
    %c0_i32_1 = arith.constant 0 : i32
    return %c0_i32, %c0_i32_0 : i32, i32
  }
  func.func @transform_5(%arg0: i32) -> (i32, i32) {
    %c0_i32 = arith.constant 0 : i32
    %c0_i32_0 = arith.constant 0 : i32
    %c0_i32_1 = arith.constant 0 : i32
    return %c0_i32, %c0_i32_0 : i32, i32
  }
  func.func @transform_6(%arg0: i32) -> (i32, i32) {
    %c0_i32 = arith.constant 0 : i32
    %c0_i32_0 = arith.constant 0 : i32
    %c0_i32_1 = arith.constant 0 : i32
    return %c0_i32, %c0_i32_0 : i32, i32
  }
  func.func @transform_7(%arg0: i32) -> (i32, i32) {
    %c0_i32 = arith.constant 0 : i32
    %c0_i32_0 = arith.constant 0 : i32
    %c0_i32_1 = arith.constant 0 : i32
    return %c0_i32, %c0_i32_0 : i32, i32
  }
  func.func @transform_8(%arg0: i32) -> (i32, i32) {
    %c0_i32 = arith.constant 0 : i32
    %c0_i32_0 = arith.constant 0 : i32
    %c0_i32_1 = arith.constant 0 : i32
    return %c0_i32, %c0_i32_0 : i32, i32
  }
  func.func @transform_9(%arg0: i32) -> (i32, i32) {
    %c0_i32 = arith.constant 0 : i32
    %c0_i32_0 = arith.constant 0 : i32
    %c0_i32_1 = arith.constant 0 : i32
    return %c0_i32, %c0_i32_0 : i32, i32
  }
  func.func @transform_10(%arg0: i32) -> (i32, i32) {
    %c0_i32 = arith.constant 0 : i32
    %c0_i32_0 = arith.constant 0 : i32
    %c0_i32_1 = arith.constant 0 : i32
    return %c0_i32, %c0_i32_0 : i32, i32
  }
  func.func @transform_11(%arg0: i32) -> (i32, i32) {
    %c0_i32 = arith.constant 0 : i32
    %c0_i32_0 = arith.constant 0 : i32
    %c0_i32_1 = arith.constant 0 : i32
    return %c0_i32, %c0_i32_0 : i32, i32
  }
  func.func @transform_12(%arg0: i32) -> (i32, i32) {
    %c0_i32 = arith.constant 0 : i32
    %c0_i32_0 = arith.constant 0 : i32
    %c0_i32_1 = arith.constant 0 : i32
    return %c0_i32, %c0_i32_0 : i32, i32
  }
  func.func @transform_13(%arg0: i32) -> (i32, i32, i32) {
    %c0_i32 = arith.constant 0 : i32
    %c0_i32_0 = arith.constant 0 : i32
    %c0_i32_1 = arith.constant 0 : i32
    return %arg0, %c0_i32, %c0_i32_0 : i32, i32, i32
  }
}

</mosaic_0001>

<llo_original>
// kernel: gnn_forward.1
$region0: #{gnn_forward.1}
  #allocation0 [shape = 'u32[]', space=smem, size = 0x4, offset = 0x4, fixed_abs, tag = 'smem constant byte address 0x4 - core index']
  #allocation1 [shape = 'u32[144,128]{1,0:T(1,128)}', space=vmem, size = 0x12000, scoped, tag = 'internal scratch']
  %s0 = inlined_call_operand.vmem [shape: f32[2,8,8], index: 0, kind: input, shape index: {}]
  %s1 = inlined_call_operand.vmem [shape: f32[2,8,8], index: 1, kind: input, shape index: {}]
  %s2 = inlined_call_operand.vmem [shape: f32[2,8,128], index: 2, kind: input, shape index: {}]
  %s3 = inlined_call_operand.vmem [shape: f32[128,128], index: 3, kind: input, shape index: {}]
  %s4 = inlined_call_operand.vmem [shape: f32[1,128], index: 4, kind: input, shape index: {}]
  %s5 = inlined_call_operand.vmem [shape: f32[128,128], index: 5, kind: input, shape index: {}]
  %s6 = inlined_call_operand.vmem [shape: f32[1,128], index: 6, kind: input, shape index: {}]
  %s7 = inlined_call_operand.vmem [shape: f32[1,128], index: 7, kind: input, shape index: {}]
  %s8 = inlined_call_operand.vmem [shape: f32[1,128], index: 8, kind: input, shape index: {}]
  %s9 = inlined_call_operand.vmem [shape: f32[256,384], index: 9, kind: input, shape index: {}]
  %s10 = inlined_call_operand.vmem [shape: f32[1,384], index: 10, kind: input, shape index: {}]
  %s11 = inlined_call_operand.vmem [shape: f32[128,384], index: 11, kind: input, shape index: {}]
  %s12 = inlined_call_operand.vmem [shape: f32[1,384], index: 12, kind: input, shape index: {}]
  %s13 = inlined_call_operand.hbm [shape: f32[2,8,128], index: 13, kind: output, shape index: {}]
  %s14 = sld [smem:[#allocation0]]
  $region85: #{gnn_forward.1} parent=0
    _
  %s16 = ssub.s32 1, %s14
  %s17 = scalar_select 0, %s16, %s14
  $region1: #{gnn_forward.1} parent=0
    #allocation2 [shape = 'u8[8192]{0}', space=vmem, size = 0x2000, scoped, tag = 'output window, operand 0']
    #allocation3 [shape = 's32[2]{0}', space=sflag, size = 0x8, scoped, tag = 'scoped memory for gnn_forward.1']
    %18 = vsyncpa [#allocation3], 0
    %s19 = scalar_lea.sflag [#allocation3], 1
    %20 = vsyncpa %s19, 0
    loop: start=0, step=1, limit=4
    $region2: #{gnn_forward.1} parent=1 // loop_pre_header
      _
    $region3: #{gnn_forward.1} parent=1 // loop_header
      %s22 = sphi 0, %s26
      %p23 = scmp.ge.s32.totalorder %s22, 4
      %s32 = sphi 0, %s34
      %s35 = sphi 0, %s32
      %s36 = sphi 0, %s35
      %s52 = sphi 0, %s36
      %s58 = sphi 0, %s60
      %s61 = sphi 0, %s58
      %s62 = sphi 0, %s61
      %s78 = sphi 0, %s62
      %s84 = sphi 0, %s86
      %s87 = sphi 0, %s84
      %s88 = sphi 0, %s87
      %s104 = sphi 0, %s88
      %s108 = sphi 0, %s108
      %s110 = sphi 0, %s108
      %s111 = sphi 0, %s110
      %s125 = sphi 0, %s111
      %s129 = sphi 0, %s129
      %s131 = sphi 0, %s129
      %s132 = sphi 0, %s131
      %s146 = sphi 0, %s132
      %s150 = sphi 0, %s150
      %s152 = sphi 0, %s150
      %s153 = sphi 0, %s152
      %s167 = sphi 0, %s153
      %s171 = sphi 0, %s171
      %s173 = sphi 0, %s171
      %s174 = sphi 0, %s173
      %s188 = sphi 0, %s174
      %s192 = sphi 0, %s192
      %s194 = sphi 0, %s192
      %s195 = sphi 0, %s194
      %s209 = sphi 0, %s195
      %s213 = sphi 0, %s213
      %s215 = sphi 0, %s213
      %s216 = sphi 0, %s215
      %s230 = sphi 0, %s216
      %s234 = sphi 0, %s234
      %s236 = sphi 0, %s234
      %s237 = sphi 0, %s236
      %s251 = sphi 0, %s237
      %s255 = sphi 0, %s255
      %s257 = sphi 0, %s255
      %s258 = sphi 0, %s257
      %s272 = sphi 0, %s258
      %s276 = sphi 0, %s276
      %s278 = sphi 0, %s276
      %s279 = sphi 0, %s278
      %s293 = sphi 0, %s279
      %s297 = sphi 0, %s297
      %s299 = sphi 0, %s297
      %s300 = sphi 0, %s299
      %s314 = sphi 0, %s300
      %s320 = sphi 0, %s322
      %s323 = sphi 0, %s320
      %s324 = sphi 0, %s323
      %s340 = sphi 0, %s324
    $region4: #{gnn_forward.1} parent=1 // loop_header_branch
      %25 = sbr.rel (%p23) target = $region8
    $region5: #{gnn_forward.1} parent=1 // loop_body
      %s27 = ssub.s32 %s22, 1
      %s28 = ssub.s32 %s22, 2
      %s29 = sadd.s32 %s22, 1
      %s30 = ssub.s32 %s22, %s29
      %p31 = scmp.eq.s32.totalorder %s30, 0
      %s33 = sadd.s32 %s32, 1
      %s34 = scalar_select %p31, %s32, %s33
      %p37 = pneg %p31
      %p38 = scmp.eq.s32.totalorder %s22, 1
      %p39 = por %p37, %p38
      %p40 = scmp.ne.s32.totalorder %s32, %s35
      %p41 = scmp.eq.s32.totalorder %s22, 0
      %p42 = por %p40, %p41
      %p43 = scmp.ne.s32.totalorder %s32, %s35
      %p44 = scmp.eq.s32.totalorder %s27, 1
      %p45 = por %p43, %p44
      %p46 = scmp.ne.s32.totalorder %s35, %s36
      %p47 = scmp.eq.s32.totalorder %s27, 0
      %p48 = por %p46, %p47
      %p49 = scmp.ne.s32.totalorder %s35, %s36
      %p50 = scmp.eq.s32.totalorder %s28, 1
      %p51 = por %p49, %p50
      %p53 = scmp.ne.s32.totalorder %s36, %s52
      %p54 = scmp.eq.s32.totalorder %s28, 0
      %p55 = por %p53, %p54
      %s56 = ssub.s32 %s22, %s29
      %p57 = scmp.eq.s32.totalorder %s56, 0
      %s59 = sadd.s32 %s58, 1
      %s60 = scalar_select %p57, %s58, %s59
      %p63 = pneg %p57
      %p64 = scmp.eq.s32.totalorder %s22, 1
      %p65 = por %p63, %p64
      %p66 = scmp.ne.s32.totalorder %s58, %s61
      %p67 = scmp.eq.s32.totalorder %s22, 0
      %p68 = por %p66, %p67
      %p69 = scmp.ne.s32.totalorder %s58, %s61
      %p70 = scmp.eq.s32.totalorder %s27, 1
      %p71 = por %p69, %p70
      %p72 = scmp.ne.s32.totalorder %s61, %s62
      %p73 = scmp.eq.s32.totalorder %s27, 0
      %p74 = por %p72, %p73
      %p75 = scmp.ne.s32.totalorder %s61, %s62
      %p76 = scmp.eq.s32.totalorder %s28, 1
      %p77 = por %p75, %p76
      %p79 = scmp.ne.s32.totalorder %s62, %s78
      %p80 = scmp.eq.s32.totalorder %s28, 0
      %p81 = por %p79, %p80
      %s82 = ssub.s32 %s22, %s29
      %p83 = scmp.eq.s32.totalorder %s82, 0
      %s85 = sadd.s32 %s84, 1
      %s86 = scalar_select %p83, %s84, %s85
      %p89 = pneg %p83
      %p90 = scmp.eq.s32.totalorder %s22, 1
      %p91 = por %p89, %p90
      %p92 = scmp.ne.s32.totalorder %s84, %s87
      %p93 = scmp.eq.s32.totalorder %s22, 0
      %p94 = por %p92, %p93
      %p95 = scmp.ne.s32.totalorder %s84, %s87
      %p96 = scmp.eq.s32.totalorder %s27, 1
      %p97 = por %p95, %p96
      %p98 = scmp.ne.s32.totalorder %s87, %s88
      %p99 = scmp.eq.s32.totalorder %s27, 0
      %p100 = por %p98, %p99
      %p101 = scmp.ne.s32.totalorder %s87, %s88
      %p102 = scmp.eq.s32.totalorder %s28, 1
      %p103 = por %p101, %p102
      %p105 = scmp.ne.s32.totalorder %s88, %s104
      %p106 = scmp.eq.s32.totalorder %s28, 0
      %p107 = por %p105, %p106
      %s109 = sadd.s32 %s108, 1
      %p112 = scmp.eq.s32.totalorder %s22, 1
      %p113 = scmp.ne.s32.totalorder %s108, %s110
      %p114 = scmp.eq.s32.totalorder %s22, 0
      %p115 = por %p113, %p114
      %p116 = scmp.ne.s32.totalorder %s108, %s110
      %p117 = scmp.eq.s32.totalorder %s27, 1
      %p118 = por %p116, %p117
      %p119 = scmp.ne.s32.totalorder %s110, %s111
      %p120 = scmp.eq.s32.totalorder %s27, 0
      %p121 = por %p119, %p120
      %p122 = scmp.ne.s32.totalorder %s110, %s111
      %p123 = scmp.eq.s32.totalorder %s28, 1
      %p124 = por %p122, %p123
      %p126 = scmp.ne.s32.totalorder %s111, %s125
      %p127 = scmp.eq.s32.totalorder %s28, 0
      %p128 = por %p126, %p127
      %s130 = sadd.s32 %s129, 1
      %p133 = scmp.eq.s32.totalorder %s22, 1
      %p134 = scmp.ne.s32.totalorder %s129, %s131
      %p135 = scmp.eq.s32.totalorder %s22, 0
      %p136 = por %p134, %p135
      %p137 = scmp.ne.s32.totalorder %s129, %s131
      %p138 = scmp.eq.s32.totalorder %s27, 1
      %p139 = por %p137, %p138
      %p140 = scmp.ne.s32.totalorder %s131, %s132
      %p141 = scmp.eq.s32.totalorder %s27, 0
      %p142 = por %p140, %p141
      %p143 = scmp.ne.s32.totalorder %s131, %s132
      %p144 = scmp.eq.s32.totalorder %s28, 1
      %p145 = por %p143, %p144
      %p147 = scmp.ne.s32.totalorder %s132, %s146
      %p148 = scmp.eq.s32.totalorder %s28, 0
      %p149 = por %p147, %p148
      %s151 = sadd.s32 %s150, 1
      %p154 = scmp.eq.s32.totalorder %s22, 1
      %p155 = scmp.ne.s32.totalorder %s150, %s152
      %p156 = scmp.eq.s32.totalorder %s22, 0
      %p157 = por %p155, %p156
      %p158 = scmp.ne.s32.totalorder %s150, %s152
      %p159 = scmp.eq.s32.totalorder %s27, 1
      %p160 = por %p158, %p159
      %p161 = scmp.ne.s32.totalorder %s152, %s153
      %p162 = scmp.eq.s32.totalorder %s27, 0
      %p163 = por %p161, %p162
      %p164 = scmp.ne.s32.totalorder %s152, %s153
      %p165 = scmp.eq.s32.totalorder %s28, 1
      %p166 = por %p164, %p165
      %p168 = scmp.ne.s32.totalorder %s153, %s167
      %p169 = scmp.eq.s32.totalorder %s28, 0
      %p170 = por %p168, %p169
      %s172 = sadd.s32 %s171, 1
      %p175 = scmp.eq.s32.totalorder %s22, 1
      %p176 = scmp.ne.s32.totalorder %s171, %s173
      %p177 = scmp.eq.s32.totalorder %s22, 0
      %p178 = por %p176, %p177
      %p179 = scmp.ne.s32.totalorder %s171, %s173
      %p180 = scmp.eq.s32.totalorder %s27, 1
      %p181 = por %p179, %p180
      %p182 = scmp.ne.s32.totalorder %s173, %s174
      %p183 = scmp.eq.s32.totalorder %s27, 0
      %p184 = por %p182, %p183
      %p185 = scmp.ne.s32.totalorder %s173, %s174
      %p186 = scmp.eq.s32.totalorder %s28, 1
      %p187 = por %p185, %p186
      %p189 = scmp.ne.s32.totalorder %s174, %s188
      %p190 = scmp.eq.s32.totalorder %s28, 0
      %p191 = por %p189, %p190
      %s193 = sadd.s32 %s192, 1
      %p196 = scmp.eq.s32.totalorder %s22, 1
      %p197 = scmp.ne.s32.totalorder %s192, %s194
      %p198 = scmp.eq.s32.totalorder %s22, 0
      %p199 = por %p197, %p198
      %p200 = scmp.ne.s32.totalorder %s192, %s194
      %p201 = scmp.eq.s32.totalorder %s27, 1
      %p202 = por %p200, %p201
      %p203 = scmp.ne.s32.totalorder %s194, %s195
      %p204 = scmp.eq.s32.totalorder %s27, 0
      %p205 = por %p203, %p204
      %p206 = scmp.ne.s32.totalorder %s194, %s195
      %p207 = scmp.eq.s32.totalorder %s28, 1
      %p208 = por %p206, %p207
      %p210 = scmp.ne.s32.totalorder %s195, %s209
      %p211 = scmp.eq.s32.totalorder %s28, 0
      %p212 = por %p210, %p211
      %s214 = sadd.s32 %s213, 1
      %p217 = scmp.eq.s32.totalorder %s22, 1
      %p218 = scmp.ne.s32.totalorder %s213, %s215
      %p219 = scmp.eq.s32.totalorder %s22, 0
      %p220 = por %p218, %p219
      %p221 = scmp.ne.s32.totalorder %s213, %s215
      %p222 = scmp.eq.s32.totalorder %s27, 1
      %p223 = por %p221, %p222
      %p224 = scmp.ne.s32.totalorder %s215, %s216
      %p225 = scmp.eq.s32.totalorder %s27, 0
      %p226 = por %p224, %p225
      %p227 = scmp.ne.s32.totalorder %s215, %s216
      %p228 = scmp.eq.s32.totalorder %s28, 1
      %p229 = por %p227, %p228
      %p231 = scmp.ne.s32.totalorder %s216, %s230
      %p232 = scmp.eq.s32.totalorder %s28, 0
      %p233 = por %p231, %p232
      %s235 = sadd.s32 %s234, 1
      %p238 = scmp.eq.s32.totalorder %s22, 1
      %p239 = scmp.ne.s32.totalorder %s234, %s236
      %p240 = scmp.eq.s32.totalorder %s22, 0
      %p241 = por %p239, %p240
      %p242 = scmp.ne.s32.totalorder %s234, %s236
      %p243 = scmp.eq.s32.totalorder %s27, 1
      %p244 = por %p242, %p243
      %p245 = scmp.ne.s32.totalorder %s236, %s237
      %p246 = scmp.eq.s32.totalorder %s27, 0
      %p247 = por %p245, %p246
      %p248 = scmp.ne.s32.totalorder %s236, %s237
      %p249 = scmp.eq.s32.totalorder %s28, 1
      %p250 = por %p248, %p249
      %p252 = scmp.ne.s32.totalorder %s237, %s251
      %p253 = scmp.eq.s32.totalorder %s28, 0
      %p254 = por %p252, %p253
      %s256 = sadd.s32 %s255, 1
      %p259 = scmp.eq.s32.totalorder %s22, 1
      %p260 = scmp.ne.s32.totalorder %s255, %s257
      %p261 = scmp.eq.s32.totalorder %s22, 0
      %p262 = por %p260, %p261
      %p263 = scmp.ne.s32.totalorder %s255, %s257
      %p264 = scmp.eq.s32.totalorder %s27, 1
      %p265 = por %p263, %p264
      %p266 = scmp.ne.s32.totalorder %s257, %s258
      %p267 = scmp.eq.s32.totalorder %s27, 0
      %p268 = por %p266, %p267
      %p269 = scmp.ne.s32.totalorder %s257, %s258
      %p270 = scmp.eq.s32.totalorder %s28, 1
      %p271 = por %p269, %p270
      %p273 = scmp.ne.s32.totalorder %s258, %s272
      %p274 = scmp.eq.s32.totalorder %s28, 0
      %p275 = por %p273, %p274
      %s277 = sadd.s32 %s276, 1
      %p280 = scmp.eq.s32.totalorder %s22, 1
      %p281 = scmp.ne.s32.totalorder %s276, %s278
      %p282 = scmp.eq.s32.totalorder %s22, 0
      %p283 = por %p281, %p282
      %p284 = scmp.ne.s32.totalorder %s276, %s278
      %p285 = scmp.eq.s32.totalorder %s27, 1
      %p286 = por %p284, %p285
      %p287 = scmp.ne.s32.totalorder %s278, %s279
      %p288 = scmp.eq.s32.totalorder %s27, 0
      %p289 = por %p287, %p288
      %p290 = scmp.ne.s32.totalorder %s278, %s279
      %p291 = scmp.eq.s32.totalorder %s28, 1
      %p292 = por %p290, %p291
      %p294 = scmp.ne.s32.totalorder %s279, %s293
      %p295 = scmp.eq.s32.totalorder %s28, 0
      %p296 = por %p294, %p295
      %s298 = sadd.s32 %s297, 1
      %p301 = scmp.eq.s32.totalorder %s22, 1
      %p302 = scmp.ne.s32.totalorder %s297, %s299
      %p303 = scmp.eq.s32.totalorder %s22, 0
      %p304 = por %p302, %p303
      %p305 = scmp.ne.s32.totalorder %s297, %s299
      %p306 = scmp.eq.s32.totalorder %s27, 1
      %p307 = por %p305, %p306
      %p308 = scmp.ne.s32.totalorder %s299, %s300
      %p309 = scmp.eq.s32.totalorder %s27, 0
      %p310 = por %p308, %p309
      %p311 = scmp.ne.s32.totalorder %s299, %s300
      %p312 = scmp.eq.s32.totalorder %s28, 1
      %p313 = por %p311, %p312
      %p315 = scmp.ne.s32.totalorder %s300, %s314
      %p316 = scmp.eq.s32.totalorder %s28, 0
      %p317 = por %p315, %p316
      %s318 = ssub.s32 %s22, %s29
      %p319 = scmp.eq.s32.totalorder %s318, 0
      %s321 = sadd.s32 %s320, 1
      %s322 = scalar_select %p319, %s320, %s321
      %p325 = pneg %p319
      %p326 = scmp.eq.s32.totalorder %s22, 1
      %p327 = por %p325, %p326
      %p328 = scmp.ne.s32.totalorder %s320, %s323
      %p329 = scmp.eq.s32.totalorder %s22, 0
      %p330 = por %p328, %p329
      %p331 = scmp.ne.s32.totalorder %s320, %s323
      %p332 = scmp.eq.s32.totalorder %s27, 1
      %p333 = por %p331, %p332
      %p334 = scmp.ne.s32.totalorder %s323, %s324
      %p335 = scmp.eq.s32.totalorder %s27, 0
      %p336 = por %p334, %p335
      %p337 = scmp.ne.s32.totalorder %s323, %s324
      %p338 = scmp.eq.s32.totalorder %s28, 1
      %p339 = por %p337, %p338
      %p341 = scmp.ne.s32.totalorder %s324, %s340
      %p342 = scmp.eq.s32.totalorder %s28, 0
      %p343 = por %p341, %p342
      %p344 = scmp.le.s32.totalorder 1, %s22
      %p345 = scmp.lt.s32.totalorder %s22, 3
      %p346 = pnand %p344, %p345
      %p347 = pneg %p346
      // Predicated region
      $region9: #{gnn_forward.1} parent=5 // pred_check
        _
      $region10: #{gnn_forward.1} parent=5 // pred_check_branch
        %349 = sbr.rel (%p346) target = $region12
      $region11: #{gnn_forward.1} parent=5 // pred_region
        %s350 = ssub.s32 %s22, 1
        // Predicated region
        $region13: #{gnn_forward.1} parent=11 // pred_check
          %p351 = pneg %p121
        $region14: #{gnn_forward.1} parent=11 // pred_check_branch
          %353 = sbr.rel (%p351) target = $region16
        $region15: #{gnn_forward.1} parent=11 // pred_region
          _
        $region16: #{gnn_forward.1} parent=11 // pred_fallthru
          _
        // Predicated region
        $region17: #{gnn_forward.1} parent=11 // pred_check
          %p354 = pneg %p142
        $region18: #{gnn_forward.1} parent=11 // pred_check_branch
          %356 = sbr.rel (%p354) target = $region20
        $region19: #{gnn_forward.1} parent=11 // pred_region
          _
        $region20: #{gnn_forward.1} parent=11 // pred_fallthru
          _
        // Predicated region
        $region21: #{gnn_forward.1} parent=11 // pred_check
          %p357 = pneg %p163
        $region22: #{gnn_forward.1} parent=11 // pred_check_branch
          %359 = sbr.rel (%p357) target = $region24
        $region23: #{gnn_forward.1} parent=11 // pred_region
          _
        $region24: #{gnn_forward.1} parent=11 // pred_fallthru
          _
        // Predicated region
        $region25: #{gnn_forward.1} parent=11 // pred_check
          %p360 = pneg %p184
        $region26: #{gnn_forward.1} parent=11 // pred_check_branch
          %362 = sbr.rel (%p360) target = $region28
        $region27: #{gnn_forward.1} parent=11 // pred_region
          _
        $region28: #{gnn_forward.1} parent=11 // pred_fallthru
          _
        // Predicated region
        $region29: #{gnn_forward.1} parent=11 // pred_check
          %p363 = pneg %p205
        $region30: #{gnn_forward.1} parent=11 // pred_check_branch
          %365 = sbr.rel (%p363) target = $region32
        $region31: #{gnn_forward.1} parent=11 // pred_region
          _
        $region32: #{gnn_forward.1} parent=11 // pred_fallthru
          _
        // Predicated region
        $region33: #{gnn_forward.1} parent=11 // pred_check
          %p366 = pneg %p226
        $region34: #{gnn_forward.1} parent=11 // pred_check_branch
          %368 = sbr.rel (%p366) target = $region36
        $region35: #{gnn_forward.1} parent=11 // pred_region
          _
        $region36: #{gnn_forward.1} parent=11 // pred_fallthru
          _
        // Predicated region
        $region37: #{gnn_forward.1} parent=11 // pred_check
          %p369 = pneg %p247
        $region38: #{gnn_forward.1} parent=11 // pred_check_branch
          %371 = sbr.rel (%p369) target = $region40
        $region39: #{gnn_forward.1} parent=11 // pred_region
          _
        $region40: #{gnn_forward.1} parent=11 // pred_fallthru
          _
        // Predicated region
        $region41: #{gnn_forward.1} parent=11 // pred_check
          %p372 = pneg %p268
        $region42: #{gnn_forward.1} parent=11 // pred_check_branch
          %374 = sbr.rel (%p372) target = $region44
        $region43: #{gnn_forward.1} parent=11 // pred_region
          _
        $region44: #{gnn_forward.1} parent=11 // pred_fallthru
          _
        // Predicated region
        $region45: #{gnn_forward.1} parent=11 // pred_check
          %p375 = pneg %p289
        $region46: #{gnn_forward.1} parent=11 // pred_check_branch
          %377 = sbr.rel (%p375) target = $region48
        $region47: #{gnn_forward.1} parent=11 // pred_region
          _
        $region48: #{gnn_forward.1} parent=11 // pred_fallthru
          _
        // Predicated region
        $region49: #{gnn_forward.1} parent=11 // pred_check
          %p378 = pneg %p310
        $region50: #{gnn_forward.1} parent=11 // pred_check_branch
          %380 = sbr.rel (%p378) target = $region52
        $region51: #{gnn_forward.1} parent=11 // pred_region
          _
        $region52: #{gnn_forward.1} parent=11 // pred_fallthru
          _
      $region12: #{gnn_forward.1} parent=5 // pred_fallthru
        _
      %p381 = scmp.lt.s32.totalorder %s22, 2
      // Predicated region
      $region53: #{gnn_forward.1} parent=5 // pred_check
        %p382 = pneg %p381
      $region54: #{gnn_forward.1} parent=5 // pred_check_branch
        %384 = sbr.rel (%p382) target = $region56
      $region55: #{gnn_forward.1} parent=5 // pred_region
        // Predicated region
        $region57: #{gnn_forward.1} parent=55 // pred_check
          %p385 = pneg %p42
        $region58: #{gnn_forward.1} parent=55 // pred_check_branch
          %387 = sbr.rel (%p385) target = $region60
        $region59: #{gnn_forward.1} parent=55 // pred_region
          %p388 = scmp.lt.s32.totalorder %s22, 1
          %s389 = scalar_select %p388, %s22, 1
          %s390 = smul.addr %s389, 8
          %s391 = scalar_lea.vmem %s0, %s390
        $region60: #{gnn_forward.1} parent=55 // pred_fallthru
          _
        // Predicated region
        $region61: #{gnn_forward.1} parent=55 // pred_check
          %p392 = pneg %p68
        $region62: #{gnn_forward.1} parent=55 // pred_check_branch
          %394 = sbr.rel (%p392) target = $region64
        $region63: #{gnn_forward.1} parent=55 // pred_region
          %p395 = scmp.lt.s32.totalorder %s22, 1
          %s396 = scalar_select %p395, %s22, 1
          %s397 = smul.addr %s396, 8
          %s398 = scalar_lea.vmem %s1, %s397
        $region64: #{gnn_forward.1} parent=55 // pred_fallthru
          _
        // Predicated region
        $region65: #{gnn_forward.1} parent=55 // pred_check
          %p399 = pneg %p94
        $region66: #{gnn_forward.1} parent=55 // pred_check_branch
          %401 = sbr.rel (%p399) target = $region68
        $region67: #{gnn_forward.1} parent=55 // pred_region
          %p402 = scmp.lt.s32.totalorder %s22, 1
          %s403 = scalar_select %p402, %s22, 1
          %s404 = smul.addr %s403, 8
          %s405 = scalar_lea.vmem %s2, %s404
        $region68: #{gnn_forward.1} parent=55 // pred_fallthru
          _
      $region56: #{gnn_forward.1} parent=5 // pred_fallthru
        _
      %p406 = scmp.le.s32.totalorder 1, %s22
      %p407 = scmp.lt.s32.totalorder %s22, 3
      %p408 = pnand %p406, %p407
      %p409 = pneg %p408
      // Predicated region
      $region69: #{gnn_forward.1} parent=5 // pred_check
        _
      $region70: #{gnn_forward.1} parent=5 // pred_check_branch
        %411 = sbr.rel (%p408) target = $region72
      $region71: #{gnn_forward.1} parent=5 // pred_region
        %s412 = ssub.s32 %s22, 1
        %p413 = scmp.lt.s32.totalorder %s27, 1
        %s414 = scalar_select %p413, %s27, 1
        %s415 = smul.addr %s414, 8
        %s416 = scalar_lea.vmem %s0, %s415
        %p417 = pneg %p48
        %p418 = pneg %p45
        %p419 = scmp.lt.s32.totalorder %s27, 1
        %s420 = scalar_select %p419, %s27, 1
        %s421 = smul.addr %s420, 8
        %s422 = scalar_lea.vmem %s1, %s421
        %p423 = pneg %p74
        %p424 = pneg %p71
        %p425 = scmp.lt.s32.totalorder %s27, 1
        %s426 = scalar_select %p425, %s27, 1
        %s427 = smul.addr %s426, 8
        %s428 = scalar_lea.vmem %s2, %s427
        %p429 = pneg %p100
        %p430 = pneg %p97
        %p431 = pneg %p121
        %p432 = pneg %p118
        %p433 = pneg %p142
        %p434 = pneg %p139
        %p435 = pneg %p163
        %p436 = pneg %p160
        %p437 = pneg %p184
        %p438 = pneg %p181
        %p439 = pneg %p205
        %p440 = pneg %p202
        %p441 = pneg %p226
        %p442 = pneg %p223
        %p443 = pneg %p247
        %p444 = pneg %p244
        %p445 = pneg %p268
        %p446 = pneg %p265
        %p447 = pneg %p289
        %p448 = pneg %p286
        %p449 = pneg %p310
        %p450 = pneg %p307
        %p451 = pneg %p336
        %p452 = pneg %p333
        %s453 = sand.u32 %s323, 1
        %s454 = scalar_lea.sflag [#allocation3], %s453
        %s455 = sand.u32 %s323, 1
        %s456 = smul.addr %s455, 8
        %s457 = scalar_lea.vmem [#allocation2], %s456
        %p458 = scmp.lt.s32.totalorder %s27, 1
        %s459 = scalar_select %p458, %s27, 1
        %s460 = smul.addr %s459, 8
        %s461 = scalar_lea.vmem %s0, %s460
        %p462 = scmp.lt.s32.totalorder %s27, 1
        %s463 = scalar_select %p462, %s27, 1
        %s464 = smul.addr %s463, 8
        %s465 = scalar_lea.vmem %s1, %s464
        %p466 = scmp.lt.s32.totalorder %s27, 1
        %s467 = scalar_select %p466, %s27, 1
        %s468 = smul.addr %s467, 8
        %s469 = scalar_lea.vmem %s2, %s468
        %v470 = vld [vmem:[%s461] sm:$0xff]
        %v471 = vld [vmem:[%s465] sm:$0xff]
        %v472 = vld [vmem:[%s3] sm:$0xff]
        %v473 = vld [vmem:[%s3 + $0x8] sm:$0xff]
        %v474 = vld [vmem:[%s3 + $0x10] sm:$0xff]
        %v475 = vld [vmem:[%s3 + $0x18] sm:$0xff]
        %v476 = vld [vmem:[%s3 + $0x20] sm:$0xff]
        %v477 = vld [vmem:[%s3 + $0x28] sm:$0xff]
        %v478 = vld [vmem:[%s3 + $0x30] sm:$0xff]
        %v479 = vld [vmem:[%s3 + $0x38] sm:$0xff]
        %v480 = vld [vmem:[%s3 + $0x40] sm:$0xff]
        %v481 = vld [vmem:[%s3 + $0x48] sm:$0xff]
        %v482 = vld [vmem:[%s3 + $0x50] sm:$0xff]
        %v483 = vld [vmem:[%s3 + $0x58] sm:$0xff]
        %v484 = vld [vmem:[%s3 + $0x60] sm:$0xff]
        %v485 = vld [vmem:[%s3 + $0x68] sm:$0xff]
        %v486 = vld [vmem:[%s3 + $0x70] sm:$0xff]
        %v487 = vld [vmem:[%s3 + $0x78] sm:$0xff]
        %v488 = vld [vmem:[%s5] sm:$0xff]
        %v489 = vld [vmem:[%s5 + $0x8] sm:$0xff]
        %v490 = vld [vmem:[%s5 + $0x10] sm:$0xff]
        %v491 = vld [vmem:[%s5 + $0x18] sm:$0xff]
        %v492 = vld [vmem:[%s5 + $0x20] sm:$0xff]
        %v493 = vld [vmem:[%s5 + $0x28] sm:$0xff]
        %v494 = vld [vmem:[%s5 + $0x30] sm:$0xff]
        %v495 = vld [vmem:[%s5 + $0x38] sm:$0xff]
        %v496 = vld [vmem:[%s5 + $0x40] sm:$0xff]
        %v497 = vld [vmem:[%s5 + $0x48] sm:$0xff]
        %v498 = vld [vmem:[%s5 + $0x50] sm:$0xff]
        %v499 = vld [vmem:[%s5 + $0x58] sm:$0xff]
        %v500 = vld [vmem:[%s5 + $0x60] sm:$0xff]
        %v501 = vld [vmem:[%s5 + $0x68] sm:$0xff]
        %v502 = vld [vmem:[%s5 + $0x70] sm:$0xff]
        %v503 = vld [vmem:[%s5 + $0x78] sm:$0xff]
        %v504 = vld [vmem:[%s4] sm:$0x1]
        %v505 = vld [vmem:[%s6] sm:$0x1]
        %v506 = vld [vmem:[%s7] sm:$0x1]
        %v507 = vld [vmem:[%s8] sm:$0x1]
        %v508 = vld [vmem:[%s9] sm:$0xff]
        %v509 = vld [vmem:[%s9 + $0x8] sm:$0xff]
        %v510 = vld [vmem:[%s9 + $0x10] sm:$0xff]
        %v511 = vld [vmem:[%s9 + $0x18] sm:$0xff]
        %v512 = vld [vmem:[%s9 + $0x20] sm:$0xff]
        %v513 = vld [vmem:[%s9 + $0x28] sm:$0xff]
        %v514 = vld [vmem:[%s9 + $0x30] sm:$0xff]
        %v515 = vld [vmem:[%s9 + $0x38] sm:$0xff]
        %v516 = vld [vmem:[%s9 + $0x40] sm:$0xff]
        %v517 = vld [vmem:[%s9 + $0x48] sm:$0xff]
        %v518 = vld [vmem:[%s9 + $0x50] sm:$0xff]
        %v519 = vld [vmem:[%s9 + $0x58] sm:$0xff]
        %v520 = vld [vmem:[%s9 + $0x60] sm:$0xff]
        %v521 = vld [vmem:[%s9 + $0x68] sm:$0xff]
        %v522 = vld [vmem:[%s9 + $0x70] sm:$0xff]
        %v523 = vld [vmem:[%s9 + $0x78] sm:$0xff]
        %v524 = vld [vmem:[%s9 + $0x80] sm:$0xff]
        %v525 = vld [vmem:[%s9 + $0x88] sm:$0xff]
        %v526 = vld [vmem:[%s9 + $0x90] sm:$0xff]
        %v527 = vld [vmem:[%s9 + $0x98] sm:$0xff]
        %v528 = vld [vmem:[%s9 + $0xa0] sm:$0xff]
        %v529 = vld [vmem:[%s9 + $0xa8] sm:$0xff]
        %v530 = vld [vmem:[%s9 + $0xb0] sm:$0xff]
        %v531 = vld [vmem:[%s9 + $0xb8] sm:$0xff]
        %v532 = vld [vmem:[%s9 + $0xc0] sm:$0xff]
        %v533 = vld [vmem:[%s9 + $0xc8] sm:$0xff]
        %v534 = vld [vmem:[%s9 + $0xd0] sm:$0xff]
        %v535 = vld [vmem:[%s9 + $0xd8] sm:$0xff]
        %v536 = vld [vmem:[%s9 + $0xe0] sm:$0xff]
        %v537 = vld [vmem:[%s9 + $0xe8] sm:$0xff]
        %v538 = vld [vmem:[%s9 + $0xf0] sm:$0xff]
        %v539 = vld [vmem:[%s9 + $0xf8] sm:$0xff]
        %v540 = vld [vmem:[%s9 + $0x100] sm:$0xff]
        %v541 = vld [vmem:[%s9 + $0x108] sm:$0xff]
        %v542 = vld [vmem:[%s9 + $0x110] sm:$0xff]
        %v543 = vld [vmem:[%s9 + $0x118] sm:$0xff]
        %v544 = vld [vmem:[%s9 + $0x120] sm:$0xff]
        %v545 = vld [vmem:[%s9 + $0x128] sm:$0xff]
        %v546 = vld [vmem:[%s9 + $0x130] sm:$0xff]
        %v547 = vld [vmem:[%s9 + $0x138] sm:$0xff]
        %v548 = vld [vmem:[%s9 + $0x140] sm:$0xff]
        %v549 = vld [vmem:[%s9 + $0x148] sm:$0xff]
        %v550 = vld [vmem:[%s9 + $0x150] sm:$0xff]
        %v551 = vld [vmem:[%s9 + $0x158] sm:$0xff]
        %v552 = vld [vmem:[%s9 + $0x160] sm:$0xff]
        %v553 = vld [vmem:[%s9 + $0x168] sm:$0xff]
        %v554 = vld [vmem:[%s9 + $0x170] sm:$0xff]
        %v555 = vld [vmem:[%s9 + $0x178] sm:$0xff]
        %v556 = vld [vmem:[%s9 + $0x180] sm:$0xff]
        %v557 = vld [vmem:[%s9 + $0x188] sm:$0xff]
        %v558 = vld [vmem:[%s9 + $0x190] sm:$0xff]
        %v559 = vld [vmem:[%s9 + $0x198] sm:$0xff]
        %v560 = vld [vmem:[%s9 + $0x1a0] sm:$0xff]
        %v561 = vld [vmem:[%s9 + $0x1a8] sm:$0xff]
        %v562 = vld [vmem:[%s9 + $0x1b0] sm:$0xff]
        %v563 = vld [vmem:[%s9 + $0x1b8] sm:$0xff]
        %v564 = vld [vmem:[%s9 + $0x1c0] sm:$0xff]
        %v565 = vld [vmem:[%s9 + $0x1c8] sm:$0xff]
        %v566 = vld [vmem:[%s9 + $0x1d0] sm:$0xff]
        %v567 = vld [vmem:[%s9 + $0x1d8] sm:$0xff]
        %v568 = vld [vmem:[%s9 + $0x1e0] sm:$0xff]
        %v569 = vld [vmem:[%s9 + $0x1e8] sm:$0xff]
        %v570 = vld [vmem:[%s9 + $0x1f0] sm:$0xff]
        %v571 = vld [vmem:[%s9 + $0x1f8] sm:$0xff]
        %v572 = vld [vmem:[%s9 + $0x200] sm:$0xff]
        %v573 = vld [vmem:[%s9 + $0x208] sm:$0xff]
        %v574 = vld [vmem:[%s9 + $0x210] sm:$0xff]
        %v575 = vld [vmem:[%s9 + $0x218] sm:$0xff]
        %v576 = vld [vmem:[%s9 + $0x220] sm:$0xff]
        %v577 = vld [vmem:[%s9 + $0x228] sm:$0xff]
        %v578 = vld [vmem:[%s9 + $0x230] sm:$0xff]
        %v579 = vld [vmem:[%s9 + $0x238] sm:$0xff]
        %v580 = vld [vmem:[%s9 + $0x240] sm:$0xff]
        %v581 = vld [vmem:[%s9 + $0x248] sm:$0xff]
        %v582 = vld [vmem:[%s9 + $0x250] sm:$0xff]
        %v583 = vld [vmem:[%s9 + $0x258] sm:$0xff]
        %v584 = vld [vmem:[%s9 + $0x260] sm:$0xff]
        %v585 = vld [vmem:[%s9 + $0x268] sm:$0xff]
        %v586 = vld [vmem:[%s9 + $0x270] sm:$0xff]
        %v587 = vld [vmem:[%s9 + $0x278] sm:$0xff]
        %v588 = vld [vmem:[%s9 + $0x280] sm:$0xff]
        %v589 = vld [vmem:[%s9 + $0x288] sm:$0xff]
        %v590 = vld [vmem:[%s9 + $0x290] sm:$0xff]
        %v591 = vld [vmem:[%s9 + $0x298] sm:$0xff]
        %v592 = vld [vmem:[%s9 + $0x2a0] sm:$0xff]
        %v593 = vld [vmem:[%s9 + $0x2a8] sm:$0xff]
        %v594 = vld [vmem:[%s9 + $0x2b0] sm:$0xff]
        %v595 = vld [vmem:[%s9 + $0x2b8] sm:$0xff]
        %v596 = vld [vmem:[%s9 + $0x2c0] sm:$0xff]
        %v597 = vld [vmem:[%s9 + $0x2c8] sm:$0xff]
        %v598 = vld [vmem:[%s9 + $0x2d0] sm:$0xff]
        %v599 = vld [vmem:[%s9 + $0x2d8] sm:$0xff]
        %v600 = vld [vmem:[%s9 + $0x2e0] sm:$0xff]
        %v601 = vld [vmem:[%s9 + $0x2e8] sm:$0xff]
        %v602 = vld [vmem:[%s9 + $0x2f0] sm:$0xff]
        %v603 = vld [vmem:[%s9 + $0x2f8] sm:$0xff]
        %v604 = vld [vmem:[%s10] sm:$0x7]
        %v605 = vld [vmem:[%s11] sm:$0xff]
        %v606 = vld [vmem:[%s11 + $0x8] sm:$0xff]
        %v607 = vld [vmem:[%s11 + $0x10] sm:$0xff]
        %v608 = vld [vmem:[%s11 + $0x18] sm:$0xff]
        %v609 = vld [vmem:[%s11 + $0x20] sm:$0xff]
        %v610 = vld [vmem:[%s11 + $0x28] sm:$0xff]
        %v611 = vld [vmem:[%s11 + $0x30] sm:$0xff]
        %v612 = vld [vmem:[%s11 + $0x38] sm:$0xff]
        %v613 = vld [vmem:[%s11 + $0x40] sm:$0xff]
        %v614 = vld [vmem:[%s11 + $0x48] sm:$0xff]
        %v615 = vld [vmem:[%s11 + $0x50] sm:$0xff]
        %v616 = vld [vmem:[%s11 + $0x58] sm:$0xff]
        %v617 = vld [vmem:[%s11 + $0x60] sm:$0xff]
        %v618 = vld [vmem:[%s11 + $0x68] sm:$0xff]
        %v619 = vld [vmem:[%s11 + $0x70] sm:$0xff]
        %v620 = vld [vmem:[%s11 + $0x78] sm:$0xff]
        %v621 = vld [vmem:[%s11 + $0x80] sm:$0xff]
        %v622 = vld [vmem:[%s11 + $0x88] sm:$0xff]
        %v623 = vld [vmem:[%s11 + $0x90] sm:$0xff]
        %v624 = vld [vmem:[%s11 + $0x98] sm:$0xff]
        %v625 = vld [vmem:[%s11 + $0xa0] sm:$0xff]
        %v626 = vld [vmem:[%s11 + $0xa8] sm:$0xff]
        %v627 = vld [vmem:[%s11 + $0xb0] sm:$0xff]
        %v628 = vld [vmem:[%s11 + $0xb8] sm:$0xff]
        %v629 = vld [vmem:[%s11 + $0xc0] sm:$0xff]
        %v630 = vld [vmem:[%s11 + $0xc8] sm:$0xff]
        %v631 = vld [vmem:[%s11 + $0xd0] sm:$0xff]
        %v632 = vld [vmem:[%s11 + $0xd8] sm:$0xff]
        %v633 = vld [vmem:[%s11 + $0xe0] sm:$0xff]
        %v634 = vld [vmem:[%s11 + $0xe8] sm:$0xff]
        %v635 = vld [vmem:[%s11 + $0xf0] sm:$0xff]
        %v636 = vld [vmem:[%s11 + $0xf8] sm:$0xff]
        %v637 = vld [vmem:[%s11 + $0x100] sm:$0xff]
        %v638 = vld [vmem:[%s11 + $0x108] sm:$0xff]
        %v639 = vld [vmem:[%s11 + $0x110] sm:$0xff]
        %v640 = vld [vmem:[%s11 + $0x118] sm:$0xff]
        %v641 = vld [vmem:[%s11 + $0x120] sm:$0xff]
        %v642 = vld [vmem:[%s11 + $0x128] sm:$0xff]
        %v643 = vld [vmem:[%s11 + $0x130] sm:$0xff]
        %v644 = vld [vmem:[%s11 + $0x138] sm:$0xff]
        %v645 = vld [vmem:[%s11 + $0x140] sm:$0xff]
        %v646 = vld [vmem:[%s11 + $0x148] sm:$0xff]
        %v647 = vld [vmem:[%s11 + $0x150] sm:$0xff]
        %v648 = vld [vmem:[%s11 + $0x158] sm:$0xff]
        %v649 = vld [vmem:[%s11 + $0x160] sm:$0xff]
        %v650 = vld [vmem:[%s11 + $0x168] sm:$0xff]
        %v651 = vld [vmem:[%s11 + $0x170] sm:$0xff]
        %v652 = vld [vmem:[%s11 + $0x178] sm:$0xff]
        %v653 = vld [vmem:[%s12] sm:$0x7]
        %v654 = vld [vmem:[%s469] sm:$0xff]
        %v656 = vlaneseq
        %v657 = vshrl.u32 %v656, 7
        %v658 = vsub.s32 0, %v657
        %v659 = vrot.slane %v504, %v658
        %661 = vmatprep.subr.mxu0 0.0
        %662 = vmatpush1.msra.mxu0 %v487
        %663 = vmatprep.subr.mxu0 0.0
        %664 = vmatpush1.msra.mxu0 %v486
        %665 = vmatprep.subr.mxu0 0.0
        %666 = vmatpush1.msra.mxu0 %v485
        %667 = vmatprep.subr.mxu0 0.0
        %668 = vmatpush1.msra.mxu0 %v484
        %669 = vmatprep.subr.mxu0 0.0
        %670 = vmatpush1.msra.mxu0 %v483
        %671 = vmatprep.subr.mxu0 0.0
        %672 = vmatpush1.msra.mxu0 %v482
        %673 = vmatprep.subr.mxu0 0.0
        %674 = vmatpush1.msra.mxu0 %v481
        %675 = vmatprep.subr.mxu0 0.0
        %676 = vmatpush1.msra.mxu0 %v480
        %677 = vmatprep.subr.mxu0 0.0
        %678 = vmatpush1.msra.mxu0 %v479
        %679 = vmatprep.subr.mxu0 0.0
        %680 = vmatpush1.msra.mxu0 %v478
        %681 = vmatprep.subr.mxu0 0.0
        %682 = vmatpush1.msra.mxu0 %v477
        %683 = vmatprep.subr.mxu0 0.0
        %684 = vmatpush1.msra.mxu0 %v476
        %685 = vmatprep.subr.mxu0 0.0
        %686 = vmatpush1.msra.mxu0 %v475
        %687 = vmatprep.subr.mxu0 0.0
        %688 = vmatpush1.msra.mxu0 %v474
        %689 = vmatprep.subr.mxu0 0.0
        %690 = vmatpush1.msra.mxu0 %v473
        %691 = vmatprep.subr.mxu0 0.0
        %692 = vmatpush1.msra.mxu0 %v472
        %693 = vmatprep.subr.mxu0 0.0
        %694 = vmatpush2.msra.mxu0 0.0
        %695 = vmatprep.subr.mxu0 0.0
        %696 = vmatpush2.msra.mxu0 0.0
        %697 = vmatprep.subr.mxu0 0.0
        %698 = vmatpush2.msra.mxu0 0.0
        %699 = vmatprep.subr.mxu0 0.0
        %700 = vmatpush2.msra.mxu0 0.0
        %701 = vmatprep.subr.mxu0 0.0
        %702 = vmatpush2.msra.mxu0 0.0
        %703 = vmatprep.subr.mxu0 0.0
        %704 = vmatpush2.msra.mxu0 0.0
        %705 = vmatprep.subr.mxu0 0.0
        %706 = vmatpush2.msra.mxu0 0.0
        %707 = vmatprep.subr.mxu0 0.0
        %708 = vmatpush2.msra.mxu0 0.0
        %709 = vmatprep.subr.mxu0 0.0
        %710 = vmatpush2.msra.mxu0 0.0
        %711 = vmatprep.subr.mxu0 0.0
        %712 = vmatpush2.msra.mxu0 0.0
        %713 = vmatprep.subr.mxu0 0.0
        %714 = vmatpush2.msra.mxu0 0.0
        %715 = vmatprep.subr.mxu0 0.0
        %716 = vmatpush2.msra.mxu0 0.0
        %717 = vmatprep.subr.mxu0 0.0
        %718 = vmatpush2.msra.mxu0 0.0
        %719 = vmatprep.subr.mxu0 0.0
        %720 = vmatpush2.msra.mxu0 0.0
        %721 = vmatprep.subr.mxu0 0.0
        %722 = vmatpush2.msra.mxu0 0.0
        %723 = vmatprep.subr.mxu0 0.0
        %724 = vmatpush2.msra.mxu0 0.0
        %725 = vmatprep.mubr.f32.mxu0 0.0
        %726 = vmatmul.mubr.f32.gmra.mxu0 %v654
        %v727 = vpop.f32.mrf.mxu0
        %v728 = vadd.f32 %v659, %v727
        %v729 = vpop.f32.mrf.mxu0
        %730 = vdwg.mxu0
        %v732 = vlaneseq
        %v733 = vshrl.u32 %v732, 7
        %v734 = vsub.s32 0, %v733
        %v735 = vrot.slane %v505, %v734
        %737 = vmatprep.subr.mxu0 0.0
        %738 = vmatpush1.msra.mxu0 %v503
        %739 = vmatprep.subr.mxu0 0.0
        %740 = vmatpush1.msra.mxu0 %v502
        %741 = vmatprep.subr.mxu0 0.0
        %742 = vmatpush1.msra.mxu0 %v501
        %743 = vmatprep.subr.mxu0 0.0
        %744 = vmatpush1.msra.mxu0 %v500
        %745 = vmatprep.subr.mxu0 0.0
        %746 = vmatpush1.msra.mxu0 %v499
        %747 = vmatprep.subr.mxu0 0.0
        %748 = vmatpush1.msra.mxu0 %v498
        %749 = vmatprep.subr.mxu0 0.0
        %750 = vmatpush1.msra.mxu0 %v497
        %751 = vmatprep.subr.mxu0 0.0
        %752 = vmatpush1.msra.mxu0 %v496
        %753 = vmatprep.subr.mxu0 0.0
        %754 = vmatpush1.msra.mxu0 %v495
        %755 = vmatprep.subr.mxu0 0.0
        %756 = vmatpush1.msra.mxu0 %v494
        %757 = vmatprep.subr.mxu0 0.0
        %758 = vmatpush1.msra.mxu0 %v493
        %759 = vmatprep.subr.mxu0 0.0
        %760 = vmatpush1.msra.mxu0 %v492
        %761 = vmatprep.subr.mxu0 0.0
        %762 = vmatpush1.msra.mxu0 %v491
        %763 = vmatprep.subr.mxu0 0.0
        %764 = vmatpush1.msra.mxu0 %v490
        %765 = vmatprep.subr.mxu0 0.0
        %766 = vmatpush1.msra.mxu0 %v489
        %767 = vmatprep.subr.mxu0 0.0
        %768 = vmatpush1.msra.mxu0 %v488
        %769 = vmatprep.subr.mxu0 0.0
        %770 = vmatpush2.msra.mxu0 0.0
        %771 = vmatprep.subr.mxu0 0.0
        %772 = vmatpush2.msra.mxu0 0.0
        %773 = vmatprep.subr.mxu0 0.0
        %774 = vmatpush2.msra.mxu0 0.0
        %775 = vmatprep.subr.mxu0 0.0
        %776 = vmatpush2.msra.mxu0 0.0
        %777 = vmatprep.subr.mxu0 0.0
        %778 = vmatpush2.msra.mxu0 0.0
        %779 = vmatprep.subr.mxu0 0.0
        %780 = vmatpush2.msra.mxu0 0.0
        %781 = vmatprep.subr.mxu0 0.0
        %782 = vmatpush2.msra.mxu0 0.0
        %783 = vmatprep.subr.mxu0 0.0
        %784 = vmatpush2.msra.mxu0 0.0
        %785 = vmatprep.subr.mxu0 0.0
        %786 = vmatpush2.msra.mxu0 0.0
        %787 = vmatprep.subr.mxu0 0.0
        %788 = vmatpush2.msra.mxu0 0.0
        %789 = vmatprep.subr.mxu0 0.0
        %790 = vmatpush2.msra.mxu0 0.0
        %791 = vmatprep.subr.mxu0 0.0
        %792 = vmatpush2.msra.mxu0 0.0
        %793 = vmatprep.subr.mxu0 0.0
        %794 = vmatpush2.msra.mxu0 0.0
        %795 = vmatprep.subr.mxu0 0.0
        %796 = vmatpush2.msra.mxu0 0.0
        %797 = vmatprep.subr.mxu0 0.0
        %798 = vmatpush2.msra.mxu0 0.0
        %799 = vmatprep.subr.mxu0 0.0
        %800 = vmatpush2.msra.mxu0 0.0
        %801 = vmatprep.mubr.f32.mxu0 0.0
        %802 = vmatmul.mubr.f32.gmra.mxu0 %v654
        %v803 = vpop.f32.mrf.mxu0
        %v804 = vadd.f32 %v735, %v803
        %v805 = vpop.f32.mrf.mxu0
        %806 = vdwg.mxu0
        %808 = vset.pattern.permute.xlu0 0
        %809 = vperm.xlu0 %808, %v470
        %v810 = vpop.permute.xlu0 %809
        %v812 = vlaneseq
        %v813 = vshrl.u32 %v812, 7
        %v814 = vsub.s32 0, %v813
        %v815 = vrot.slane %v728, %v814
        %v816 = vmul.f32 %v810, %v815
        %817 = vset.pattern.permute.xlu0 1
        %818 = vperm.xlu0 %817, %v470
        %v819 = vpop.permute.xlu0 %818
        %v821 = vlaneseq
        %v822 = vshrl.u32 %v821, 7
        %v823 = vsub.s32 1, %v822
        %v824 = vrot.slane %v728, %v823
        %v825 = vmul.f32 %v819, %v824
        %v826 = vadd.f32 %v816, %v825
        %827 = vset.pattern.permute.xlu0 2
        %828 = vperm.xlu0 %827, %v470
        %v829 = vpop.permute.xlu0 %828
        %v831 = vlaneseq
        %v832 = vshrl.u32 %v831, 7
        %v833 = vsub.s32 2, %v832
        %v834 = vrot.slane %v728, %v833
        %v835 = vmul.f32 %v829, %v834
        %v836 = vadd.f32 %v826, %v835
        %837 = vset.pattern.permute.xlu0 3
        %838 = vperm.xlu0 %837, %v470
        %v839 = vpop.permute.xlu0 %838
        %v841 = vlaneseq
        %v842 = vshrl.u32 %v841, 7
        %v843 = vsub.s32 3, %v842
        %v844 = vrot.slane %v728, %v843
        %v845 = vmul.f32 %v839, %v844
        %v846 = vadd.f32 %v836, %v845
        %847 = vset.pattern.permute.xlu0 4
        %848 = vperm.xlu0 %847, %v470
        %v849 = vpop.permute.xlu0 %848
        %v851 = vlaneseq
        %v852 = vshrl.u32 %v851, 7
        %v853 = vsub.s32 4, %v852
        %v854 = vrot.slane %v728, %v853
        %v855 = vmul.f32 %v849, %v854
        %v856 = vadd.f32 %v846, %v855
        %857 = vset.pattern.permute.xlu0 5
        %858 = vperm.xlu0 %857, %v470
        %v859 = vpop.permute.xlu0 %858
        %v861 = vlaneseq
        %v862 = vshrl.u32 %v861, 7
        %v863 = vsub.s32 5, %v862
        %v864 = vrot.slane %v728, %v863
        %v865 = vmul.f32 %v859, %v864
        %v866 = vadd.f32 %v856, %v865
        %867 = vset.pattern.permute.xlu0 6
        %868 = vperm.xlu0 %867, %v470
        %v869 = vpop.permute.xlu0 %868
        %v871 = vlaneseq
        %v872 = vshrl.u32 %v871, 7
        %v873 = vsub.s32 6, %v872
        %v874 = vrot.slane %v728, %v873
        %v875 = vmul.f32 %v869, %v874
        %v876 = vadd.f32 %v866, %v875
        %877 = vset.pattern.permute.xlu0 7
        %878 = vperm.xlu0 %877, %v470
        %v879 = vpop.permute.xlu0 %878
        %v881 = vlaneseq
        %v882 = vshrl.u32 %v881, 7
        %v883 = vsub.s32 7, %v882
        %v884 = vrot.slane %v728, %v883
        %v885 = vmul.f32 %v879, %v884
        %v886 = vadd.f32 %v876, %v885
        %v888 = vlaneseq
        %v889 = vshrl.u32 %v888, 7
        %v890 = vsub.s32 0, %v889
        %v891 = vrot.slane %v506, %v890
        %v893 = vadd.f32 %v886, %v891
        %895 = vset.pattern.permute.xlu0 0
        %896 = vperm.xlu0 %895, %v471
        %v897 = vpop.permute.xlu0 %896
        %v899 = vlaneseq
        %v900 = vshrl.u32 %v899, 7
        %v901 = vsub.s32 0, %v900
        %v902 = vrot.slane %v804, %v901
        %v903 = vmul.f32 %v897, %v902
        %904 = vset.pattern.permute.xlu0 1
        %905 = vperm.xlu0 %904, %v471
        %v906 = vpop.permute.xlu0 %905
        %v908 = vlaneseq
        %v909 = vshrl.u32 %v908, 7
        %v910 = vsub.s32 1, %v909
        %v911 = vrot.slane %v804, %v910
        %v912 = vmul.f32 %v906, %v911
        %v913 = vadd.f32 %v903, %v912
        %914 = vset.pattern.permute.xlu0 2
        %915 = vperm.xlu0 %914, %v471
        %v916 = vpop.permute.xlu0 %915
        %v918 = vlaneseq
        %v919 = vshrl.u32 %v918, 7
        %v920 = vsub.s32 2, %v919
        %v921 = vrot.slane %v804, %v920
        %v922 = vmul.f32 %v916, %v921
        %v923 = vadd.f32 %v913, %v922
        %924 = vset.pattern.permute.xlu0 3
        %925 = vperm.xlu0 %924, %v471
        %v926 = vpop.permute.xlu0 %925
        %v928 = vlaneseq
        %v929 = vshrl.u32 %v928, 7
        %v930 = vsub.s32 3, %v929
        %v931 = vrot.slane %v804, %v930
        %v932 = vmul.f32 %v926, %v931
        %v933 = vadd.f32 %v923, %v932
        %934 = vset.pattern.permute.xlu0 4
        %935 = vperm.xlu0 %934, %v471
        %v936 = vpop.permute.xlu0 %935
        %v938 = vlaneseq
        %v939 = vshrl.u32 %v938, 7
        %v940 = vsub.s32 4, %v939
        %v941 = vrot.slane %v804, %v940
        %v942 = vmul.f32 %v936, %v941
        %v943 = vadd.f32 %v933, %v942
        %944 = vset.pattern.permute.xlu0 5
        %945 = vperm.xlu0 %944, %v471
        %v946 = vpop.permute.xlu0 %945
        %v948 = vlaneseq
        %v949 = vshrl.u32 %v948, 7
        %v950 = vsub.s32 5, %v949
        %v951 = vrot.slane %v804, %v950
        %v952 = vmul.f32 %v946, %v951
        %v953 = vadd.f32 %v943, %v952
        %954 = vset.pattern.permute.xlu0 6
        %955 = vperm.xlu0 %954, %v471
        %v956 = vpop.permute.xlu0 %955
        %v958 = vlaneseq
        %v959 = vshrl.u32 %v958, 7
        %v960 = vsub.s32 6, %v959
        %v961 = vrot.slane %v804, %v960
        %v962 = vmul.f32 %v956, %v961
        %v963 = vadd.f32 %v953, %v962
        %964 = vset.pattern.permute.xlu0 7
        %965 = vperm.xlu0 %964, %v471
        %v966 = vpop.permute.xlu0 %965
        %v968 = vlaneseq
        %v969 = vshrl.u32 %v968, 7
        %v970 = vsub.s32 7, %v969
        %v971 = vrot.slane %v804, %v970
        %v972 = vmul.f32 %v966, %v971
        %v973 = vadd.f32 %v963, %v972
        %v975 = vlaneseq
        %v976 = vshrl.u32 %v975, 7
        %v977 = vsub.s32 0, %v976
        %v978 = vrot.slane %v507, %v977
        %v980 = vadd.f32 %v973, %v978
        %v982 = vlaneseq
        %v983 = vshrl.u32 %v982, 7
        %v984 = vsub.s32 0, %v983
        %v985 = vrot.slane %v604, %v984
        %v986 = vlaneseq
        %v987 = vshrl.u32 %v986, 7
        %v988 = vsub.s32 1, %v987
        %v989 = vrot.slane %v604, %v988
        %v990 = vlaneseq
        %v991 = vshrl.u32 %v990, 7
        %v992 = vsub.s32 2, %v991
        %v993 = vrot.slane %v604, %v992
        %997 = vmatprep.subr.mxu0 %v554
        %998 = vmatpush1.msra.mxu0 %v553
        %999 = vmatprep.subr.mxu0 %v551
        %1000 = vmatpush1.msra.mxu0 %v550
        %1001 = vmatprep.subr.mxu0 %v548
        %1002 = vmatpush1.msra.mxu0 %v547
        %1003 = vmatprep.subr.mxu0 %v545
        %1004 = vmatpush1.msra.mxu0 %v544
        %1005 = vmatprep.subr.mxu0 %v542
        %1006 = vmatpush1.msra.mxu0 %v541
        %1007 = vmatprep.subr.mxu0 %v539
        %1008 = vmatpush1.msra.mxu0 %v538
        %1009 = vmatprep.subr.mxu0 %v536
        %1010 = vmatpush1.msra.mxu0 %v535
        %1011 = vmatprep.subr.mxu0 %v533
        %1012 = vmatpush1.msra.mxu0 %v532
        %1013 = vmatprep.subr.mxu0 %v530
        %1014 = vmatpush1.msra.mxu0 %v529
        %1015 = vmatprep.subr.mxu0 %v527
        %1016 = vmatpush1.msra.mxu0 %v526
        %1017 = vmatprep.subr.mxu0 %v524
        %1018 = vmatpush1.msra.mxu0 %v523
        %1019 = vmatprep.subr.mxu0 %v521
        %1020 = vmatpush1.msra.mxu0 %v520
        %1021 = vmatprep.subr.mxu0 %v518
        %1022 = vmatpush1.msra.mxu0 %v517
        %1023 = vmatprep.subr.mxu0 %v515
        %1024 = vmatpush1.msra.mxu0 %v514
        %1025 = vmatprep.subr.mxu0 %v512
        %1026 = vmatpush1.msra.mxu0 %v511
        %1027 = vmatprep.subr.mxu0 %v509
        %1028 = vmatpush1.msra.mxu0 %v508
        %1029 = vmatprep.subr.mxu0 %v602
        %1030 = vmatpush2.msra.mxu0 %v601
        %1031 = vmatprep.subr.mxu0 %v599
        %1032 = vmatpush2.msra.mxu0 %v598
        %1033 = vmatprep.subr.mxu0 %v596
        %1034 = vmatpush2.msra.mxu0 %v595
        %1035 = vmatprep.subr.mxu0 %v593
        %1036 = vmatpush2.msra.mxu0 %v592
        %1037 = vmatprep.subr.mxu0 %v590
        %1038 = vmatpush2.msra.mxu0 %v589
        %1039 = vmatprep.subr.mxu0 %v587
        %1040 = vmatpush2.msra.mxu0 %v586
        %1041 = vmatprep.subr.mxu0 %v584
        %1042 = vmatpush2.msra.mxu0 %v583
        %1043 = vmatprep.subr.mxu0 %v581
        %1044 = vmatpush2.msra.mxu0 %v580
        %1045 = vmatprep.subr.mxu0 %v578
        %1046 = vmatpush2.msra.mxu0 %v577
        %1047 = vmatprep.subr.mxu0 %v575
        %1048 = vmatpush2.msra.mxu0 %v574
        %1049 = vmatprep.subr.mxu0 %v572
        %1050 = vmatpush2.msra.mxu0 %v571
        %1051 = vmatprep.subr.mxu0 %v569
        %1052 = vmatpush2.msra.mxu0 %v568
        %1053 = vmatprep.subr.mxu0 %v566
        %1054 = vmatpush2.msra.mxu0 %v565
        %1055 = vmatprep.subr.mxu0 %v563
        %1056 = vmatpush2.msra.mxu0 %v562
        %1057 = vmatprep.subr.mxu0 %v560
        %1058 = vmatpush2.msra.mxu0 %v559
        %1059 = vmatprep.subr.mxu0 %v557
        %1060 = vmatpush2.msra.mxu0 %v556
        %1061 = vmatprep.mubr.f32.mxu0 %v980
        %1062 = vmatmul.mubr.f32.gmra.mxu0 %v893
        %v1063 = vpop.f32.mrf.mxu0
        %v1064 = vadd.f32 %v985, %v1063
        %v1065 = vpop.f32.mrf.mxu0
        %v1066 = vadd.f32 %v989, %v1065
        %1067 = vdwg.mxu0
        %1068 = vmatprep.subr.mxu0 0.0
        %1069 = vmatpush1.msra.mxu0 %v555
        %1070 = vmatprep.subr.mxu0 0.0
        %1071 = vmatpush1.msra.mxu0 %v552
        %1072 = vmatprep.subr.mxu0 0.0
        %1073 = vmatpush1.msra.mxu0 %v549
        %1074 = vmatprep.subr.mxu0 0.0
        %1075 = vmatpush1.msra.mxu0 %v546
        %1076 = vmatprep.subr.mxu0 0.0
        %1077 = vmatpush1.msra.mxu0 %v543
        %1078 = vmatprep.subr.mxu0 0.0
        %1079 = vmatpush1.msra.mxu0 %v540
        %1080 = vmatprep.subr.mxu0 0.0
        %1081 = vmatpush1.msra.mxu0 %v537
        %1082 = vmatprep.subr.mxu0 0.0
        %1083 = vmatpush1.msra.mxu0 %v534
        %1084 = vmatprep.subr.mxu0 0.0
        %1085 = vmatpush1.msra.mxu0 %v531
        %1086 = vmatprep.subr.mxu0 0.0
        %1087 = vmatpush1.msra.mxu0 %v528
        %1088 = vmatprep.subr.mxu0 0.0
        %1089 = vmatpush1.msra.mxu0 %v525
        %1090 = vmatprep.subr.mxu0 0.0
        %1091 = vmatpush1.msra.mxu0 %v522
        %1092 = vmatprep.subr.mxu0 0.0
        %1093 = vmatpush1.msra.mxu0 %v519
        %1094 = vmatprep.subr.mxu0 0.0
        %1095 = vmatpush1.msra.mxu0 %v516
        %1096 = vmatprep.subr.mxu0 0.0
        %1097 = vmatpush1.msra.mxu0 %v513
        %1098 = vmatprep.subr.mxu0 0.0
        %1099 = vmatpush1.msra.mxu0 %v510
        %1100 = vmatprep.subr.mxu0 0.0
        %1101 = vmatpush2.msra.mxu0 %v603
        %1102 = vmatprep.subr.mxu0 0.0
        %1103 = vmatpush2.msra.mxu0 %v600
        %1104 = vmatprep.subr.mxu0 0.0
        %1105 = vmatpush2.msra.mxu0 %v597
        %1106 = vmatprep.subr.mxu0 0.0
        %1107 = vmatpush2.msra.mxu0 %v594
        %1108 = vmatprep.subr.mxu0 0.0
        %1109 = vmatpush2.msra.mxu0 %v591
        %1110 = vmatprep.subr.mxu0 0.0
        %1111 = vmatpush2.msra.mxu0 %v588
        %1112 = vmatprep.subr.mxu0 0.0
        %1113 = vmatpush2.msra.mxu0 %v585
        %1114 = vmatprep.subr.mxu0 0.0
        %1115 = vmatpush2.msra.mxu0 %v582
        %1116 = vmatprep.subr.mxu0 0.0
        %1117 = vmatpush2.msra.mxu0 %v579
        %1118 = vmatprep.subr.mxu0 0.0
        %1119 = vmatpush2.msra.mxu0 %v576
        %1120 = vmatprep.subr.mxu0 0.0
        %1121 = vmatpush2.msra.mxu0 %v573
        %1122 = vmatprep.subr.mxu0 0.0
        %1123 = vmatpush2.msra.mxu0 %v570
        %1124 = vmatprep.subr.mxu0 0.0
        %1125 = vmatpush2.msra.mxu0 %v567
        %1126 = vmatprep.subr.mxu0 0.0
        %1127 = vmatpush2.msra.mxu0 %v564
        %1128 = vmatprep.subr.mxu0 0.0
        %1129 = vmatpush2.msra.mxu0 %v561
        %1130 = vmatprep.subr.mxu0 0.0
        %1131 = vmatpush2.msra.mxu0 %v558
        %1132 = vmatprep.mubr.f32.mxu0 %v980
        %1133 = vmatmul.mubr.f32.gmra.mxu0 %v893
        %v1134 = vpop.f32.mrf.mxu0
        %v1135 = vadd.f32 %v993, %v1134
        %v1136 = vpop.f32.mrf.mxu0
        %1137 = vdwg.mxu0
        %v1139 = vlaneseq
        %v1140 = vshrl.u32 %v1139, 7
        %v1141 = vsub.s32 0, %v1140
        %v1142 = vrot.slane %v653, %v1141
        %v1143 = vlaneseq
        %v1144 = vshrl.u32 %v1143, 7
        %v1145 = vsub.s32 1, %v1144
        %v1146 = vrot.slane %v653, %v1145
        %v1147 = vlaneseq
        %v1148 = vshrl.u32 %v1147, 7
        %v1149 = vsub.s32 2, %v1148
        %v1150 = vrot.slane %v653, %v1149
        %1154 = vmatprep.subr.mxu0 %v651
        %1155 = vmatpush1.msra.mxu0 %v650
        %1156 = vmatprep.subr.mxu0 %v648
        %1157 = vmatpush1.msra.mxu0 %v647
        %1158 = vmatprep.subr.mxu0 %v645
        %1159 = vmatpush1.msra.mxu0 %v644
        %1160 = vmatprep.subr.mxu0 %v642
        %1161 = vmatpush1.msra.mxu0 %v641
        %1162 = vmatprep.subr.mxu0 %v639
        %1163 = vmatpush1.msra.mxu0 %v638
        %1164 = vmatprep.subr.mxu0 %v636
        %1165 = vmatpush1.msra.mxu0 %v635
        %1166 = vmatprep.subr.mxu0 %v633
        %1167 = vmatpush1.msra.mxu0 %v632
        %1168 = vmatprep.subr.mxu0 %v630
        %1169 = vmatpush1.msra.mxu0 %v629
        %1170 = vmatprep.subr.mxu0 %v627
        %1171 = vmatpush1.msra.mxu0 %v626
        %1172 = vmatprep.subr.mxu0 %v624
        %1173 = vmatpush1.msra.mxu0 %v623
        %1174 = vmatprep.subr.mxu0 %v621
        %1175 = vmatpush1.msra.mxu0 %v620
        %1176 = vmatprep.subr.mxu0 %v618
        %1177 = vmatpush1.msra.mxu0 %v617
        %1178 = vmatprep.subr.mxu0 %v615
        %1179 = vmatpush1.msra.mxu0 %v614
        %1180 = vmatprep.subr.mxu0 %v612
        %1181 = vmatpush1.msra.mxu0 %v611
        %1182 = vmatprep.subr.mxu0 %v609
        %1183 = vmatpush1.msra.mxu0 %v608
        %1184 = vmatprep.subr.mxu0 %v606
        %1185 = vmatpush1.msra.mxu0 %v605
        %1186 = vmatprep.subr.mxu0 0.0
        %1187 = vmatpush2.msra.mxu0 0.0
        %1188 = vmatprep.subr.mxu0 0.0
        %1189 = vmatpush2.msra.mxu0 0.0
        %1190 = vmatprep.subr.mxu0 0.0
        %1191 = vmatpush2.msra.mxu0 0.0
        %1192 = vmatprep.subr.mxu0 0.0
        %1193 = vmatpush2.msra.mxu0 0.0
        %1194 = vmatprep.subr.mxu0 0.0
        %1195 = vmatpush2.msra.mxu0 0.0
        %1196 = vmatprep.subr.mxu0 0.0
        %1197 = vmatpush2.msra.mxu0 0.0
        %1198 = vmatprep.subr.mxu0 0.0
        %1199 = vmatpush2.msra.mxu0 0.0
        %1200 = vmatprep.subr.mxu0 0.0
        %1201 = vmatpush2.msra.mxu0 0.0
        %1202 = vmatprep.subr.mxu0 0.0
        %1203 = vmatpush2.msra.mxu0 0.0
        %1204 = vmatprep.subr.mxu0 0.0
        %1205 = vmatpush2.msra.mxu0 0.0
        %1206 = vmatprep.subr.mxu0 0.0
        %1207 = vmatpush2.msra.mxu0 0.0
        %1208 = vmatprep.subr.mxu0 0.0
        %1209 = vmatpush2.msra.mxu0 0.0
        %1210 = vmatprep.subr.mxu0 0.0
        %1211 = vmatpush2.msra.mxu0 0.0
        %1212 = vmatprep.subr.mxu0 0.0
        %1213 = vmatpush2.msra.mxu0 0.0
        %1214 = vmatprep.subr.mxu0 0.0
        %1215 = vmatpush2.msra.mxu0 0.0
        %1216 = vmatprep.subr.mxu0 0.0
        %1217 = vmatpush2.msra.mxu0 0.0
        %1218 = vmatprep.mubr.f32.mxu0 0.0
        %1219 = vmatmul.mubr.f32.gmra.mxu0 %v654
        %v1220 = vpop.f32.mrf.mxu0
        %v1221 = vadd.f32 %v1142, %v1220
        %v1222 = vpop.f32.mrf.mxu0
        %v1223 = vadd.f32 %v1146, %v1222
        %1224 = vdwg.mxu0
        %1225 = vmatprep.subr.mxu0 0.0
        %1226 = vmatpush1.msra.mxu0 %v652
        %1227 = vmatprep.subr.mxu0 0.0
        %1228 = vmatpush1.msra.mxu0 %v649
        %1229 = vmatprep.subr.mxu0 0.0
        %1230 = vmatpush1.msra.mxu0 %v646
        %1231 = vmatprep.subr.mxu0 0.0
        %1232 = vmatpush1.msra.mxu0 %v643
        %1233 = vmatprep.subr.mxu0 0.0
        %1234 = vmatpush1.msra.mxu0 %v640
        %1235 = vmatprep.subr.mxu0 0.0
        %1236 = vmatpush1.msra.mxu0 %v637
        %1237 = vmatprep.subr.mxu0 0.0
        %1238 = vmatpush1.msra.mxu0 %v634
        %1239 = vmatprep.subr.mxu0 0.0
        %1240 = vmatpush1.msra.mxu0 %v631
        %1241 = vmatprep.subr.mxu0 0.0
        %1242 = vmatpush1.msra.mxu0 %v628
        %1243 = vmatprep.subr.mxu0 0.0
        %1244 = vmatpush1.msra.mxu0 %v625
        %1245 = vmatprep.subr.mxu0 0.0
        %1246 = vmatpush1.msra.mxu0 %v622
        %1247 = vmatprep.subr.mxu0 0.0
        %1248 = vmatpush1.msra.mxu0 %v619
        %1249 = vmatprep.subr.mxu0 0.0
        %1250 = vmatpush1.msra.mxu0 %v616
        %1251 = vmatprep.subr.mxu0 0.0
        %1252 = vmatpush1.msra.mxu0 %v613
        %1253 = vmatprep.subr.mxu0 0.0
        %1254 = vmatpush1.msra.mxu0 %v610
        %1255 = vmatprep.subr.mxu0 0.0
        %1256 = vmatpush1.msra.mxu0 %v607
        %1257 = vmatprep.subr.mxu0 0.0
        %1258 = vmatpush2.msra.mxu0 0.0
        %1259 = vmatprep.subr.mxu0 0.0
        %1260 = vmatpush2.msra.mxu0 0.0
        %1261 = vmatprep.subr.mxu0 0.0
        %1262 = vmatpush2.msra.mxu0 0.0
        %1263 = vmatprep.subr.mxu0 0.0
        %1264 = vmatpush2.msra.mxu0 0.0
        %1265 = vmatprep.subr.mxu0 0.0
        %1266 = vmatpush2.msra.mxu0 0.0
        %1267 = vmatprep.subr.mxu0 0.0
        %1268 = vmatpush2.msra.mxu0 0.0
        %1269 = vmatprep.subr.mxu0 0.0
        %1270 = vmatpush2.msra.mxu0 0.0
        %1271 = vmatprep.subr.mxu0 0.0
        %1272 = vmatpush2.msra.mxu0 0.0
        %1273 = vmatprep.subr.mxu0 0.0
        %1274 = vmatpush2.msra.mxu0 0.0
        %1275 = vmatprep.subr.mxu0 0.0
        %1276 = vmatpush2.msra.mxu0 0.0
        %1277 = vmatprep.subr.mxu0 0.0
        %1278 = vmatpush2.msra.mxu0 0.0
        %1279 = vmatprep.subr.mxu0 0.0
        %1280 = vmatpush2.msra.mxu0 0.0
        %1281 = vmatprep.subr.mxu0 0.0
        %1282 = vmatpush2.msra.mxu0 0.0
        %1283 = vmatprep.subr.mxu0 0.0
        %1284 = vmatpush2.msra.mxu0 0.0
        %1285 = vmatprep.subr.mxu0 0.0
        %1286 = vmatpush2.msra.mxu0 0.0
        %1287 = vmatprep.subr.mxu0 0.0
        %1288 = vmatpush2.msra.mxu0 0.0
        %1289 = vmatprep.mubr.f32.mxu0 0.0
        %1290 = vmatmul.mubr.f32.gmra.mxu0 %v654
        %v1291 = vpop.f32.mrf.mxu0
        %v1292 = vadd.f32 %v1150, %v1291
        %v1293 = vpop.f32.mrf.mxu0
        %1294 = vdwg.mxu0
        %v1295 = vadd.f32 %v1064, %v1221
        %v1296 = vxor.u32 %v1295, 2147483648
        %v1297 = vmul.f32 %v1296, 1.442695
        %v1298 = vpow.pop %v1297
        %v1299 = vadd.f32 %v1298, 1.0
        %v1300 = vrcp.pop %v1299
        %v1301 = vmul.f32 1.0, %v1300
        %v1302 = vadd.f32 %v1066, %v1223
        %v1303 = vxor.u32 %v1302, 2147483648
        %v1304 = vmul.f32 %v1303, 1.442695
        %v1305 = vpow.pop %v1304
        %v1306 = vadd.f32 %v1305, 1.0
        %v1307 = vrcp.pop %v1306
        %v1308 = vmul.f32 1.0, %v1307
        %v1309 = vmul.f32 %v1301, %v1292
        %v1310 = vadd.f32 %v1135, %v1309
        %v1311 = vtanh.pop %v1310
        %v1312 = vsub.f32 %v654, %v1311
        %v1313 = vmul.f32 %v1308, %v1312
        %v1314 = vadd.f32 %v1311, %v1313
        %1315 = vmatprep.subr.mxu0 0.0
        %1316 = vmatpush1.msra.mxu0 %v487
        %1317 = vmatprep.subr.mxu0 0.0
        %1318 = vmatpush1.msra.mxu0 %v486
        %1319 = vmatprep.subr.mxu0 0.0
        %1320 = vmatpush1.msra.mxu0 %v485
        %1321 = vmatprep.subr.mxu0 0.0
        %1322 = vmatpush1.msra.mxu0 %v484
        %1323 = vmatprep.subr.mxu0 0.0
        %1324 = vmatpush1.msra.mxu0 %v483
        %1325 = vmatprep.subr.mxu0 0.0
        %1326 = vmatpush1.msra.mxu0 %v482
        %1327 = vmatprep.subr.mxu0 0.0
        %1328 = vmatpush1.msra.mxu0 %v481
        %1329 = vmatprep.subr.mxu0 0.0
        %1330 = vmatpush1.msra.mxu0 %v480
        %1331 = vmatprep.subr.mxu0 0.0
        %1332 = vmatpush1.msra.mxu0 %v479
        %1333 = vmatprep.subr.mxu0 0.0
        %1334 = vmatpush1.msra.mxu0 %v478
        %1335 = vmatprep.subr.mxu0 0.0
        %1336 = vmatpush1.msra.mxu0 %v477
        %1337 = vmatprep.subr.mxu0 0.0
        %1338 = vmatpush1.msra.mxu0 %v476
        %1339 = vmatprep.subr.mxu0 0.0
        %1340 = vmatpush1.msra.mxu0 %v475
        %1341 = vmatprep.subr.mxu0 0.0
        %1342 = vmatpush1.msra.mxu0 %v474
        %1343 = vmatprep.subr.mxu0 0.0
        %1344 = vmatpush1.msra.mxu0 %v473
        %1345 = vmatprep.subr.mxu0 0.0
        %1346 = vmatpush1.msra.mxu0 %v472
        %1347 = vmatprep.subr.mxu0 0.0
        %1348 = vmatpush2.msra.mxu0 0.0
        %1349 = vmatprep.subr.mxu0 0.0
        %1350 = vmatpush2.msra.mxu0 0.0
        %1351 = vmatprep.subr.mxu0 0.0
        %1352 = vmatpush2.msra.mxu0 0.0
        %1353 = vmatprep.subr.mxu0 0.0
        %1354 = vmatpush2.msra.mxu0 0.0
        %1355 = vmatprep.subr.mxu0 0.0
        %1356 = vmatpush2.msra.mxu0 0.0
        %1357 = vmatprep.subr.mxu0 0.0
        %1358 = vmatpush2.msra.mxu0 0.0
        %1359 = vmatprep.subr.mxu0 0.0
        %1360 = vmatpush2.msra.mxu0 0.0
        %1361 = vmatprep.subr.mxu0 0.0
        %1362 = vmatpush2.msra.mxu0 0.0
        %1363 = vmatprep.subr.mxu0 0.0
        %1364 = vmatpush2.msra.mxu0 0.0
        %1365 = vmatprep.subr.mxu0 0.0
        %1366 = vmatpush2.msra.mxu0 0.0
        %1367 = vmatprep.subr.mxu0 0.0
        %1368 = vmatpush2.msra.mxu0 0.0
        %1369 = vmatprep.subr.mxu0 0.0
        %1370 = vmatpush2.msra.mxu0 0.0
        %1371 = vmatprep.subr.mxu0 0.0
        %1372 = vmatpush2.msra.mxu0 0.0
        %1373 = vmatprep.subr.mxu0 0.0
        %1374 = vmatpush2.msra.mxu0 0.0
        %1375 = vmatprep.subr.mxu0 0.0
        %1376 = vmatpush2.msra.mxu0 0.0
        %1377 = vmatprep.subr.mxu0 0.0
        %1378 = vmatpush2.msra.mxu0 0.0
        %1379 = vmatprep.mubr.f32.mxu0 0.0
        %1380 = vmatmul.mubr.f32.gmra.mxu0 %v1314
        %v1381 = vpop.f32.mrf.mxu0
        %v1382 = vadd.f32 %v659, %v1381
        %v1383 = vpop.f32.mrf.mxu0
        %1384 = vdwg.mxu0
        %1385 = vmatprep.subr.mxu0 0.0
        %1386 = vmatpush1.msra.mxu0 %v503
        %1387 = vmatprep.subr.mxu0 0.0
        %1388 = vmatpush1.msra.mxu0 %v502
        %1389 = vmatprep.subr.mxu0 0.0
        %1390 = vmatpush1.msra.mxu0 %v501
        %1391 = vmatprep.subr.mxu0 0.0
        %1392 = vmatpush1.msra.mxu0 %v500
        %1393 = vmatprep.subr.mxu0 0.0
        %1394 = vmatpush1.msra.mxu0 %v499
        %1395 = vmatprep.subr.mxu0 0.0
        %1396 = vmatpush1.msra.mxu0 %v498
        %1397 = vmatprep.subr.mxu0 0.0
        %1398 = vmatpush1.msra.mxu0 %v497
        %1399 = vmatprep.subr.mxu0 0.0
        %1400 = vmatpush1.msra.mxu0 %v496
        %1401 = vmatprep.subr.mxu0 0.0
        %1402 = vmatpush1.msra.mxu0 %v495
        %1403 = vmatprep.subr.mxu0 0.0
        %1404 = vmatpush1.msra.mxu0 %v494
        %1405 = vmatprep.subr.mxu0 0.0
        %1406 = vmatpush1.msra.mxu0 %v493
        %1407 = vmatprep.subr.mxu0 0.0
        %1408 = vmatpush1.msra.mxu0 %v492
        %1409 = vmatprep.subr.mxu0 0.0
        %1410 = vmatpush1.msra.mxu0 %v491
        %1411 = vmatprep.subr.mxu0 0.0
        %1412 = vmatpush1.msra.mxu0 %v490
        %1413 = vmatprep.subr.mxu0 0.0
        %1414 = vmatpush1.msra.mxu0 %v489
        %1415 = vmatprep.subr.mxu0 0.0
        %1416 = vmatpush1.msra.mxu0 %v488
        %1417 = vmatprep.subr.mxu0 0.0
        %1418 = vmatpush2.msra.mxu0 0.0
        %1419 = vmatprep.subr.mxu0 0.0
        %1420 = vmatpush2.msra.mxu0 0.0
        %1421 = vmatprep.subr.mxu0 0.0
        %1422 = vmatpush2.msra.mxu0 0.0
        %1423 = vmatprep.subr.mxu0 0.0
        %1424 = vmatpush2.msra.mxu0 0.0
        %1425 = vmatprep.subr.mxu0 0.0
        %1426 = vmatpush2.msra.mxu0 0.0
        %1427 = vmatprep.subr.mxu0 0.0
        %1428 = vmatpush2.msra.mxu0 0.0
        %1429 = vmatprep.subr.mxu0 0.0
        %1430 = vmatpush2.msra.mxu0 0.0
        %1431 = vmatprep.subr.mxu0 0.0
        %1432 = vmatpush2.msra.mxu0 0.0
        %1433 = vmatprep.subr.mxu0 0.0
        %1434 = vmatpush2.msra.mxu0 0.0
        %1435 = vmatprep.subr.mxu0 0.0
        %1436 = vmatpush2.msra.mxu0 0.0
        %1437 = vmatprep.subr.mxu0 0.0
        %1438 = vmatpush2.msra.mxu0 0.0
        %1439 = vmatprep.subr.mxu0 0.0
        %1440 = vmatpush2.msra.mxu0 0.0
        %1441 = vmatprep.subr.mxu0 0.0
        %1442 = vmatpush2.msra.mxu0 0.0
        %1443 = vmatprep.subr.mxu0 0.0
        %1444 = vmatpush2.msra.mxu0 0.0
        %1445 = vmatprep.subr.mxu0 0.0
        %1446 = vmatpush2.msra.mxu0 0.0
        %1447 = vmatprep.subr.mxu0 0.0
        %1448 = vmatpush2.msra.mxu0 0.0
        %1449 = vmatprep.mubr.f32.mxu0 0.0
        %1450 = vmatmul.mubr.f32.gmra.mxu0 %v1314
        %v1451 = vpop.f32.mrf.mxu0
        %v1452 = vadd.f32 %v735, %v1451
        %v1453 = vpop.f32.mrf.mxu0
        %1454 = vdwg.mxu0
        %v1455 = vlaneseq
        %v1456 = vshrl.u32 %v1455, 7
        %v1457 = vsub.s32 0, %v1456
        %v1458 = vrot.slane %v1382, %v1457
        %v1459 = vmul.f32 %v810, %v1458
        %v1460 = vlaneseq
        %v1461 = vshrl.u32 %v1460, 7
        %v1462 = vsub.s32 1, %v1461
        %v1463 = vrot.slane %v1382, %v1462
        %v1464 = vmul.f32 %v819, %v1463
        %v1465 = vadd.f32 %v1459, %v1464
        %v1466 = vlaneseq
        %v1467 = vshrl.u32 %v1466, 7
        %v1468 = vsub.s32 2, %v1467
        %v1469 = vrot.slane %v1382, %v1468
        %v1470 = vmul.f32 %v829, %v1469
        %v1471 = vadd.f32 %v1465, %v1470
        %v1472 = vlaneseq
        %v1473 = vshrl.u32 %v1472, 7
        %v1474 = vsub.s32 3, %v1473
        %v1475 = vrot.slane %v1382, %v1474
        %v1476 = vmul.f32 %v839, %v1475
        %v1477 = vadd.f32 %v1471, %v1476
        %v1478 = vlaneseq
        %v1479 = vshrl.u32 %v1478, 7
        %v1480 = vsub.s32 4, %v1479
        %v1481 = vrot.slane %v1382, %v1480
        %v1482 = vmul.f32 %v849, %v1481
        %v1483 = vadd.f32 %v1477, %v1482
        %v1484 = vlaneseq
        %v1485 = vshrl.u32 %v1484, 7
        %v1486 = vsub.s32 5, %v1485
        %v1487 = vrot.slane %v1382, %v1486
        %v1488 = vmul.f32 %v859, %v1487
        %v1489 = vadd.f32 %v1483, %v1488
        %v1490 = vlaneseq
        %v1491 = vshrl.u32 %v1490, 7
        %v1492 = vsub.s32 6, %v1491
        %v1493 = vrot.slane %v1382, %v1492
        %v1494 = vmul.f32 %v869, %v1493
        %v1495 = vadd.f32 %v1489, %v1494
        %v1496 = vlaneseq
        %v1497 = vshrl.u32 %v1496, 7
        %v1498 = vsub.s32 7, %v1497
        %v1499 = vrot.slane %v1382, %v1498
        %v1500 = vmul.f32 %v879, %v1499
        %v1501 = vadd.f32 %v1495, %v1500
        %v1502 = vadd.f32 %v1501, %v891
        %v1503 = vlaneseq
        %v1504 = vshrl.u32 %v1503, 7
        %v1505 = vsub.s32 0, %v1504
        %v1506 = vrot.slane %v1452, %v1505
        %v1507 = vmul.f32 %v897, %v1506
        %v1508 = vlaneseq
        %v1509 = vshrl.u32 %v1508, 7
        %v1510 = vsub.s32 1, %v1509
        %v1511 = vrot.slane %v1452, %v1510
        %v1512 = vmul.f32 %v906, %v1511
        %v1513 = vadd.f32 %v1507, %v1512
        %v1514 = vlaneseq
        %v1515 = vshrl.u32 %v1514, 7
        %v1516 = vsub.s32 2, %v1515
        %v1517 = vrot.slane %v1452, %v1516
        %v1518 = vmul.f32 %v916, %v1517
        %v1519 = vadd.f32 %v1513, %v1518
        %v1520 = vlaneseq
        %v1521 = vshrl.u32 %v1520, 7
        %v1522 = vsub.s32 3, %v1521
        %v1523 = vrot.slane %v1452, %v1522
        %v1524 = vmul.f32 %v926, %v1523
        %v1525 = vadd.f32 %v1519, %v1524
        %v1526 = vlaneseq
        %v1527 = vshrl.u32 %v1526, 7
        %v1528 = vsub.s32 4, %v1527
        %v1529 = vrot.slane %v1452, %v1528
        %v1530 = vmul.f32 %v936, %v1529
        %v1531 = vadd.f32 %v1525, %v1530
        %v1532 = vlaneseq
        %v1533 = vshrl.u32 %v1532, 7
        %v1534 = vsub.s32 5, %v1533
        %v1535 = vrot.slane %v1452, %v1534
        %v1536 = vmul.f32 %v946, %v1535
        %v1537 = vadd.f32 %v1531, %v1536
        %v1538 = vlaneseq
        %v1539 = vshrl.u32 %v1538, 7
        %v1540 = vsub.s32 6, %v1539
        %v1541 = vrot.slane %v1452, %v1540
        %v1542 = vmul.f32 %v956, %v1541
        %v1543 = vadd.f32 %v1537, %v1542
        %v1544 = vlaneseq
        %v1545 = vshrl.u32 %v1544, 7
        %v1546 = vsub.s32 7, %v1545
        %v1547 = vrot.slane %v1452, %v1546
        %v1548 = vmul.f32 %v966, %v1547
        %v1549 = vadd.f32 %v1543, %v1548
        %v1550 = vadd.f32 %v1549, %v978
        %1551 = vmatprep.subr.mxu0 %v554
        %1552 = vmatpush1.msra.mxu0 %v553
        %1553 = vmatprep.subr.mxu0 %v551
        %1554 = vmatpush1.msra.mxu0 %v550
        %1555 = vmatprep.subr.mxu0 %v548
        %1556 = vmatpush1.msra.mxu0 %v547
        %1557 = vmatprep.subr.mxu0 %v545
        %1558 = vmatpush1.msra.mxu0 %v544
        %1559 = vmatprep.subr.mxu0 %v542
        %1560 = vmatpush1.msra.mxu0 %v541
        %1561 = vmatprep.subr.mxu0 %v539
        %1562 = vmatpush1.msra.mxu0 %v538
        %1563 = vmatprep.subr.mxu0 %v536
        %1564 = vmatpush1.msra.mxu0 %v535
        %1565 = vmatprep.subr.mxu0 %v533
        %1566 = vmatpush1.msra.mxu0 %v532
        %1567 = vmatprep.subr.mxu0 %v530
        %1568 = vmatpush1.msra.mxu0 %v529
        %1569 = vmatprep.subr.mxu0 %v527
        %1570 = vmatpush1.msra.mxu0 %v526
        %1571 = vmatprep.subr.mxu0 %v524
        %1572 = vmatpush1.msra.mxu0 %v523
        %1573 = vmatprep.subr.mxu0 %v521
        %1574 = vmatpush1.msra.mxu0 %v520
        %1575 = vmatprep.subr.mxu0 %v518
        %1576 = vmatpush1.msra.mxu0 %v517
        %1577 = vmatprep.subr.mxu0 %v515
        %1578 = vmatpush1.msra.mxu0 %v514
        %1579 = vmatprep.subr.mxu0 %v512
        %1580 = vmatpush1.msra.mxu0 %v511
        %1581 = vmatprep.subr.mxu0 %v509
        %1582 = vmatpush1.msra.mxu0 %v508
        %1583 = vmatprep.subr.mxu0 %v602
        %1584 = vmatpush2.msra.mxu0 %v601
        %1585 = vmatprep.subr.mxu0 %v599
        %1586 = vmatpush2.msra.mxu0 %v598
        %1587 = vmatprep.subr.mxu0 %v596
        %1588 = vmatpush2.msra.mxu0 %v595
        %1589 = vmatprep.subr.mxu0 %v593
        %1590 = vmatpush2.msra.mxu0 %v592
        %1591 = vmatprep.subr.mxu0 %v590
        %1592 = vmatpush2.msra.mxu0 %v589
        %1593 = vmatprep.subr.mxu0 %v587
        %1594 = vmatpush2.msra.mxu0 %v586
        %1595 = vmatprep.subr.mxu0 %v584
        %1596 = vmatpush2.msra.mxu0 %v583
        %1597 = vmatprep.subr.mxu0 %v581
        %1598 = vmatpush2.msra.mxu0 %v580
        %1599 = vmatprep.subr.mxu0 %v578
        %1600 = vmatpush2.msra.mxu0 %v577
        %1601 = vmatprep.subr.mxu0 %v575
        %1602 = vmatpush2.msra.mxu0 %v574
        %1603 = vmatprep.subr.mxu0 %v572
        %1604 = vmatpush2.msra.mxu0 %v571
        %1605 = vmatprep.subr.mxu0 %v569
        %1606 = vmatpush2.msra.mxu0 %v568
        %1607 = vmatprep.subr.mxu0 %v566
        %1608 = vmatpush2.msra.mxu0 %v565
        %1609 = vmatprep.subr.mxu0 %v563
        %1610 = vmatpush2.msra.mxu0 %v562
        %1611 = vmatprep.subr.mxu0 %v560
        %1612 = vmatpush2.msra.mxu0 %v559
        %1613 = vmatprep.subr.mxu0 %v557
        %1614 = vmatpush2.msra.mxu0 %v556
        %1615 = vmatprep.mubr.f32.mxu0 %v1550
        %1616 = vmatmul.mubr.f32.gmra.mxu0 %v1502
        %v1617 = vpop.f32.mrf.mxu0
        %v1618 = vadd.f32 %v985, %v1617
        %v1619 = vpop.f32.mrf.mxu0
        %v1620 = vadd.f32 %v989, %v1619
        %1621 = vdwg.mxu0
        %1622 = vmatprep.subr.mxu0 0.0
        %1623 = vmatpush1.msra.mxu0 %v555
        %1624 = vmatprep.subr.mxu0 0.0
        %1625 = vmatpush1.msra.mxu0 %v552
        %1626 = vmatprep.subr.mxu0 0.0
        %1627 = vmatpush1.msra.mxu0 %v549
        %1628 = vmatprep.subr.mxu0 0.0
        %1629 = vmatpush1.msra.mxu0 %v546
        %1630 = vmatprep.subr.mxu0 0.0
        %1631 = vmatpush1.msra.mxu0 %v543
        %1632 = vmatprep.subr.mxu0 0.0
        %1633 = vmatpush1.msra.mxu0 %v540
        %1634 = vmatprep.subr.mxu0 0.0
        %1635 = vmatpush1.msra.mxu0 %v537
        %1636 = vmatprep.subr.mxu0 0.0
        %1637 = vmatpush1.msra.mxu0 %v534
        %1638 = vmatprep.subr.mxu0 0.0
        %1639 = vmatpush1.msra.mxu0 %v531
        %1640 = vmatprep.subr.mxu0 0.0
        %1641 = vmatpush1.msra.mxu0 %v528
        %1642 = vmatprep.subr.mxu0 0.0
        %1643 = vmatpush1.msra.mxu0 %v525
        %1644 = vmatprep.subr.mxu0 0.0
        %1645 = vmatpush1.msra.mxu0 %v522
        %1646 = vmatprep.subr.mxu0 0.0
        %1647 = vmatpush1.msra.mxu0 %v519
        %1648 = vmatprep.subr.mxu0 0.0
        %1649 = vmatpush1.msra.mxu0 %v516
        %1650 = vmatprep.subr.mxu0 0.0
        %1651 = vmatpush1.msra.mxu0 %v513
        %1652 = vmatprep.subr.mxu0 0.0
        %1653 = vmatpush1.msra.mxu0 %v510
        %1654 = vmatprep.subr.mxu0 0.0
        %1655 = vmatpush2.msra.mxu0 %v603
        %1656 = vmatprep.subr.mxu0 0.0
        %1657 = vmatpush2.msra.mxu0 %v600
        %1658 = vmatprep.subr.mxu0 0.0
        %1659 = vmatpush2.msra.mxu0 %v597
        %1660 = vmatprep.subr.mxu0 0.0
        %1661 = vmatpush2.msra.mxu0 %v594
        %1662 = vmatprep.subr.mxu0 0.0
        %1663 = vmatpush2.msra.mxu0 %v591
        %1664 = vmatprep.subr.mxu0 0.0
        %1665 = vmatpush2.msra.mxu0 %v588
        %1666 = vmatprep.subr.mxu0 0.0
        %1667 = vmatpush2.msra.mxu0 %v585
        %1668 = vmatprep.subr.mxu0 0.0
        %1669 = vmatpush2.msra.mxu0 %v582
        %1670 = vmatprep.subr.mxu0 0.0
        %1671 = vmatpush2.msra.mxu0 %v579
        %1672 = vmatprep.subr.mxu0 0.0
        %1673 = vmatpush2.msra.mxu0 %v576
        %1674 = vmatprep.subr.mxu0 0.0
        %1675 = vmatpush2.msra.mxu0 %v573
        %1676 = vmatprep.subr.mxu0 0.0
        %1677 = vmatpush2.msra.mxu0 %v570
        %1678 = vmatprep.subr.mxu0 0.0
        %1679 = vmatpush2.msra.mxu0 %v567
        %1680 = vmatprep.subr.mxu0 0.0
        %1681 = vmatpush2.msra.mxu0 %v564
        %1682 = vmatprep.subr.mxu0 0.0
        %1683 = vmatpush2.msra.mxu0 %v561
        %1684 = vmatprep.subr.mxu0 0.0
        %1685 = vmatpush2.msra.mxu0 %v558
        %1686 = vmatprep.mubr.f32.mxu0 %v1550
        %1687 = vmatmul.mubr.f32.gmra.mxu0 %v1502
        %v1688 = vpop.f32.mrf.mxu0
        %v1689 = vadd.f32 %v993, %v1688
        %v1690 = vpop.f32.mrf.mxu0
        %1691 = vdwg.mxu0
        %1692 = vmatprep.subr.mxu0 %v651
        %1693 = vmatpush1.msra.mxu0 %v650
        %1694 = vmatprep.subr.mxu0 %v648
        %1695 = vmatpush1.msra.mxu0 %v647
        %1696 = vmatprep.subr.mxu0 %v645
        %1697 = vmatpush1.msra.mxu0 %v644
        %1698 = vmatprep.subr.mxu0 %v642
        %1699 = vmatpush1.msra.mxu0 %v641
        %1700 = vmatprep.subr.mxu0 %v639
        %1701 = vmatpush1.msra.mxu0 %v638
        %1702 = vmatprep.subr.mxu0 %v636
        %1703 = vmatpush1.msra.mxu0 %v635
        %1704 = vmatprep.subr.mxu0 %v633
        %1705 = vmatpush1.msra.mxu0 %v632
        %1706 = vmatprep.subr.mxu0 %v630
        %1707 = vmatpush1.msra.mxu0 %v629
        %1708 = vmatprep.subr.mxu0 %v627
        %1709 = vmatpush1.msra.mxu0 %v626
        %1710 = vmatprep.subr.mxu0 %v624
        %1711 = vmatpush1.msra.mxu0 %v623
        %1712 = vmatprep.subr.mxu0 %v621
        %1713 = vmatpush1.msra.mxu0 %v620
        %1714 = vmatprep.subr.mxu0 %v618
        %1715 = vmatpush1.msra.mxu0 %v617
        %1716 = vmatprep.subr.mxu0 %v615
        %1717 = vmatpush1.msra.mxu0 %v614
        %1718 = vmatprep.subr.mxu0 %v612
        %1719 = vmatpush1.msra.mxu0 %v611
        %1720 = vmatprep.subr.mxu0 %v609
        %1721 = vmatpush1.msra.mxu0 %v608
        %1722 = vmatprep.subr.mxu0 %v606
        %1723 = vmatpush1.msra.mxu0 %v605
        %1724 = vmatprep.subr.mxu0 0.0
        %1725 = vmatpush2.msra.mxu0 0.0
        %1726 = vmatprep.subr.mxu0 0.0
        %1727 = vmatpush2.msra.mxu0 0.0
        %1728 = vmatprep.subr.mxu0 0.0
        %1729 = vmatpush2.msra.mxu0 0.0
        %1730 = vmatprep.subr.mxu0 0.0
        %1731 = vmatpush2.msra.mxu0 0.0
        %1732 = vmatprep.subr.mxu0 0.0
        %1733 = vmatpush2.msra.mxu0 0.0
        %1734 = vmatprep.subr.mxu0 0.0
        %1735 = vmatpush2.msra.mxu0 0.0
        %1736 = vmatprep.subr.mxu0 0.0
        %1737 = vmatpush2.msra.mxu0 0.0
        %1738 = vmatprep.subr.mxu0 0.0
        %1739 = vmatpush2.msra.mxu0 0.0
        %1740 = vmatprep.subr.mxu0 0.0
        %1741 = vmatpush2.msra.mxu0 0.0
        %1742 = vmatprep.subr.mxu0 0.0
        %1743 = vmatpush2.msra.mxu0 0.0
        %1744 = vmatprep.subr.mxu0 0.0
        %1745 = vmatpush2.msra.mxu0 0.0
        %1746 = vmatprep.subr.mxu0 0.0
        %1747 = vmatpush2.msra.mxu0 0.0
        %1748 = vmatprep.subr.mxu0 0.0
        %1749 = vmatpush2.msra.mxu0 0.0
        %1750 = vmatprep.subr.mxu0 0.0
        %1751 = vmatpush2.msra.mxu0 0.0
        %1752 = vmatprep.subr.mxu0 0.0
        %1753 = vmatpush2.msra.mxu0 0.0
        %1754 = vmatprep.subr.mxu0 0.0
        %1755 = vmatpush2.msra.mxu0 0.0
        %1756 = vmatprep.mubr.f32.mxu0 0.0
        %1757 = vmatmul.mubr.f32.gmra.mxu0 %v1314
        %v1758 = vpop.f32.mrf.mxu0
        %v1759 = vadd.f32 %v1142, %v1758
        %v1760 = vpop.f32.mrf.mxu0
        %v1761 = vadd.f32 %v1146, %v1760
        %1762 = vdwg.mxu0
        %1763 = vmatprep.subr.mxu0 0.0
        %1764 = vmatpush1.msra.mxu0 %v652
        %1765 = vmatprep.subr.mxu0 0.0
        %1766 = vmatpush1.msra.mxu0 %v649
        %1767 = vmatprep.subr.mxu0 0.0
        %1768 = vmatpush1.msra.mxu0 %v646
        %1769 = vmatprep.subr.mxu0 0.0
        %1770 = vmatpush1.msra.mxu0 %v643
        %1771 = vmatprep.subr.mxu0 0.0
        %1772 = vmatpush1.msra.mxu0 %v640
        %1773 = vmatprep.subr.mxu0 0.0
        %1774 = vmatpush1.msra.mxu0 %v637
        %1775 = vmatprep.subr.mxu0 0.0
        %1776 = vmatpush1.msra.mxu0 %v634
        %1777 = vmatprep.subr.mxu0 0.0
        %1778 = vmatpush1.msra.mxu0 %v631
        %1779 = vmatprep.subr.mxu0 0.0
        %1780 = vmatpush1.msra.mxu0 %v628
        %1781 = vmatprep.subr.mxu0 0.0
        %1782 = vmatpush1.msra.mxu0 %v625
        %1783 = vmatprep.subr.mxu0 0.0
        %1784 = vmatpush1.msra.mxu0 %v622
        %1785 = vmatprep.subr.mxu0 0.0
        %1786 = vmatpush1.msra.mxu0 %v619
        %1787 = vmatprep.subr.mxu0 0.0
        %1788 = vmatpush1.msra.mxu0 %v616
        %1789 = vmatprep.subr.mxu0 0.0
        %1790 = vmatpush1.msra.mxu0 %v613
        %1791 = vmatprep.subr.mxu0 0.0
        %1792 = vmatpush1.msra.mxu0 %v610
        %1793 = vmatprep.subr.mxu0 0.0
        %1794 = vmatpush1.msra.mxu0 %v607
        %1795 = vmatprep.subr.mxu0 0.0
        %1796 = vmatpush2.msra.mxu0 0.0
        %1797 = vmatprep.subr.mxu0 0.0
        %1798 = vmatpush2.msra.mxu0 0.0
        %1799 = vmatprep.subr.mxu0 0.0
        %1800 = vmatpush2.msra.mxu0 0.0
        %1801 = vmatprep.subr.mxu0 0.0
        %1802 = vmatpush2.msra.mxu0 0.0
        %1803 = vmatprep.subr.mxu0 0.0
        %1804 = vmatpush2.msra.mxu0 0.0
        %1805 = vmatprep.subr.mxu0 0.0
        %1806 = vmatpush2.msra.mxu0 0.0
        %1807 = vmatprep.subr.mxu0 0.0
        %1808 = vmatpush2.msra.mxu0 0.0
        %1809 = vmatprep.subr.mxu0 0.0
        %1810 = vmatpush2.msra.mxu0 0.0
        %1811 = vmatprep.subr.mxu0 0.0
        %1812 = vmatpush2.msra.mxu0 0.0
        %1813 = vmatprep.subr.mxu0 0.0
        %1814 = vmatpush2.msra.mxu0 0.0
        %1815 = vmatprep.subr.mxu0 0.0
        %1816 = vmatpush2.msra.mxu0 0.0
        %1817 = vmatprep.subr.mxu0 0.0
        %1818 = vmatpush2.msra.mxu0 0.0
        %1819 = vmatprep.subr.mxu0 0.0
        %1820 = vmatpush2.msra.mxu0 0.0
        %1821 = vmatprep.subr.mxu0 0.0
        %1822 = vmatpush2.msra.mxu0 0.0
        %1823 = vmatprep.subr.mxu0 0.0
        %1824 = vmatpush2.msra.mxu0 0.0
        %1825 = vmatprep.subr.mxu0 0.0
        %1826 = vmatpush2.msra.mxu0 0.0
        %1827 = vmatprep.mubr.f32.mxu0 0.0
        %1828 = vmatmul.mubr.f32.gmra.mxu0 %v1314
        %v1829 = vpop.f32.mrf.mxu0
        %v1830 = vadd.f32 %v1150, %v1829
        %v1831 = vpop.f32.mrf.mxu0
        %1832 = vdwg.mxu0
        %v1833 = vadd.f32 %v1618, %v1759
        %v1834 = vxor.u32 %v1833, 2147483648
        %v1835 = vmul.f32 %v1834, 1.442695
        %v1836 = vpow.pop %v1835
        %v1837 = vadd.f32 %v1836, 1.0
        %v1838 = vrcp.pop %v1837
        %v1839 = vmul.f32 1.0, %v1838
        %v1840 = vadd.f32 %v1620, %v1761
        %v1841 = vxor.u32 %v1840, 2147483648
        %v1842 = vmul.f32 %v1841, 1.442695
        %v1843 = vpow.pop %v1842
        %v1844 = vadd.f32 %v1843, 1.0
        %v1845 = vrcp.pop %v1844
        %v1846 = vmul.f32 1.0, %v1845
        %v1847 = vmul.f32 %v1839, %v1830
        %v1848 = vadd.f32 %v1689, %v1847
        %v1849 = vtanh.pop %v1848
        %v1850 = vsub.f32 %v1314, %v1849
        %v1851 = vmul.f32 %v1846, %v1850
        %v1852 = vadd.f32 %v1849, %v1851
        %1853 = vst [vmem:[%s457] sm:$0xff] %v1852
        %s1854 = sand.u32 %s323, 1
        %s1855 = scalar_lea.sflag [#allocation3], %s1854
        %s1856 = sand.u32 %s323, 1
        %s1857 = smul.addr %s1856, 8
        %s1858 = scalar_lea.vmem [#allocation2], %s1857
        // Predicated region
        $region73: #{gnn_forward.1} parent=71 // pred_check
          %p1859 = pneg %p333
        $region74: #{gnn_forward.1} parent=71 // pred_check_branch
          %1861 = sbr.rel (%p1859) target = $region76
        $region75: #{gnn_forward.1} parent=71 // pred_region
          %s1863 = ssub.s32 128, 128
          %1864 = vsyncadd %s1855, %s1863
          %s1865 = smul.addr %s27, 128
          %s1866 = scalar_lea.hbm %s13, %s1865
          %s1868 = sshll.u32 %s1858, 4
          %s1869 = int_to_ptr.vmem [resolvable:$true] %s1868
          %1871 = dma.vmem_to_hbm [thread:$0]  %s1869, 128, %s1866, %s1855
        $region76: #{gnn_forward.1} parent=71 // pred_fallthru
          _
      $region72: #{gnn_forward.1} parent=5 // pred_fallthru
        _
      %p1872 = scmp.le.s32.totalorder 2, %s22
      // Predicated region
      $region77: #{gnn_forward.1} parent=5 // pred_check
        %p1873 = pneg %p1872
      $region78: #{gnn_forward.1} parent=5 // pred_check_branch
        %1875 = sbr.rel (%p1873) target = $region80
      $region79: #{gnn_forward.1} parent=5 // pred_region
        %s1876 = ssub.s32 %s22, 2
        // Predicated region
        $region81: #{gnn_forward.1} parent=79 // pred_check
          %p1877 = pneg %p339
        $region82: #{gnn_forward.1} parent=79 // pred_check_branch
          %1879 = sbr.rel (%p1877) target = $region84
        $region83: #{gnn_forward.1} parent=79 // pred_region
          %s1880 = sand.u32 %s324, 1
          %s1881 = scalar_lea.sflag [#allocation3], %s1880
          %s1882 = sand.u32 %s324, 1
          %s1883 = smul.addr %s1882, 8
          %s1884 = scalar_lea.vmem [#allocation2], %s1883
          %1885 = dma.done %s1881, 128
        $region84: #{gnn_forward.1} parent=79 // pred_fallthru
          _
      $region80: #{gnn_forward.1} parent=5 // pred_fallthru
        _
    $region6: #{gnn_forward.1} parent=1 // loop_footer
      %s26 = sadd.s32 1, %s22
    $region7: #{gnn_forward.1} parent=1 // loop_footer_branch
      %21 = sbr.rel target = $region3
    $region8: #{gnn_forward.1} parent=1 // loop_exit
      _
    %1886 = vsyncpa [#allocation3], 1
    %s1887 = scalar_lea.sflag [#allocation3], 1
    %1888 = vsyncpa %s1887, 1

</llo_original>
